<compile_context>
chip_gen: v6e
topology: v6e:2x2x1
jax: 0.10.0
libtpu: 0.0.40
codegen_flags: <defaults>
</compile_context>

<pallas_src>
import functools

import jax
import jax.numpy as jnp
from jax import lax
from jax.experimental import pallas as pl
from jax.experimental.pallas import tpu as pltpu


def _round_up(x, m):
    return (x + m - 1) // m * m


def convffn_kernel(x_ref, w1t_ref, b1_ref, w2t_ref, b2_ref, o_ref, *,
                   nb, chunk_cols, n_chunks, precision):
    """One grid step.  x_ref / o_ref are (NB, C, T) tiles, spatial on lanes."""
    w1t = w1t_ref[...]                              # (Ch, C)
    w2t = w2t_ref[...]                              # (C, Ch)
    b1 = b1_ref[...].astype(jnp.float32)            # (Ch, 1)
    b2 = b2_ref[...].astype(jnp.float32)            # (C, 1)

    def do_chunk(b, c0):
        x = x_ref[b, :, pl.ds(c0, chunk_cols)]                       # (C, cc)
        # expand: 1x1 conv #1 + ReLU  -> (Ch, cc), f32 accumulation on the MXU
        h = jnp.dot(w1t, x.astype(w1t.dtype),
                    preferred_element_type=jnp.float32, precision=precision)
        h = jnp.maximum(h + b1, 0.0)
        # project: 1x1 conv #2 + ReLU -> (C, cc)
        y = jnp.dot(w2t, h.astype(w2t.dtype),
                    preferred_element_type=jnp.float32, precision=precision)
        y = jnp.maximum(y + b2, 0.0)
        # residual add, lane-dense store
        o_ref[b, :, pl.ds(c0, chunk_cols)] = (
            x.astype(jnp.float32) + y).astype(o_ref.dtype)

    trips = nb * n_chunks
    if trips == 1:
        do_chunk(0, 0)
    else:
        def body(i, carry):
            b = i // n_chunks
            j = i - b * n_chunks
            c0 = pl.multiple_of(j * chunk_cols, 128)
            do_chunk(b, c0)
            return carry

        lax.fori_loop(0, trips, body, 0, unroll=(trips <= 8))


def _tpu_vmem_capacity_bytes():
    try:
        cap = int(getattr(pltpu.get_tpu_info(), "vmem_capacity_bytes", 0))
        if cap > 0:
            return cap
    except Exception:
        pass
    return 128 * 1024 * 1024      # v5e / v6e default


def _select_tiling(N, C, Ch, HW_pad, x_itemsize, vmem_cap):
    """Pick (NB, tile_cols, chunk_cols, vmem_limit) sized by bytes per step."""
    # v7x (<=64 MiB VMEM/TC, ~3.2 TB/s HBM) wants bigger per-step bytes but a
    # smaller absolute VMEM footprint than v5e/v6e (128 MiB/TC).
    small_vmem = vmem_cap <= 80 * 1024 * 1024
    target_step_bytes = (8 if small_vmem else 4) * 1024 * 1024
    vmem_budget = min(int(0.75 * vmem_cap), 100 * 1024 * 1024)

    sub_x = max(8, 8 * (4 // x_itemsize))     # sublane multiple for x dtype
    C_pad_x = _round_up(C, sub_x)
    C_pad32 = _round_up(C, 8)
    Ch_pad32 = _round_up(Ch, 8)

    col_opts = [c for c in range(128, HW_pad + 1, 128) if HW_pad % c == 0]
    per_col_bytes = 2 * C_pad_x * x_itemsize          # in + out, per lane column

    # 1) grow the spatial tile toward the per-step byte target
    tile_cols = col_opts[0]
    for c in col_opts:
        if c * per_col_bytes <= target_step_bytes:
            tile_cols = c

    # 2) if the whole spatial extent is still under target, block the batch axis
    NB = 1
    if tile_cols == HW_pad:
        for d in range(1, N + 1):
            if N % d == 0 and d * tile_cols * per_col_bytes <= target_step_bytes:
                NB = d

    def chunking(tc):
        # keep the live f32 hidden activation roughly within the vreg file
        cc = 128
        for c in range(128, tc + 1, 128):
            if tc % c == 0 and Ch_pad32 * c * 4 <= 192 * 1024:
                cc = c
        return cc

    def vmem_needed(nb, tc, cc):
        tile = nb * C_pad_x * tc * x_itemsize
        weights = (_round_up(Ch, sub_x) * _round_up(C, 128)
                   + _round_up(C, sub_x) * _round_up(Ch, 128)
                   + (_round_up(Ch, sub_x) + _round_up(C, sub_x)) * 128
                   ) * x_itemsize
        live = (Ch_pad32 + 2 * C_pad32) * cc * 4
        return 2 * 2 * tile + weights + 2 * live       # x/out double-buffered

    # 3) shrink until the working set fits the VMEM budget
    while vmem_needed(NB, tile_cols, chunking(tile_cols)) > vmem_budget:
        if NB > 1:
            NB = max(d for d in range(1, NB) if N % d == 0)
        else:
            smaller = [c for c in col_opts if c < tile_cols]
            if not smaller:
                break
            tile_cols = max(smaller)

    # 4) make sure a parallel axis has >= 2 steps so both v7x TCs get work
    if (N // NB) * (HW_pad // tile_cols) < 2:
        if NB > 1:
            NB = max(d for d in range(1, N) if N % d == 0 and d <= N // 2)
        else:
            smaller = [c for c in col_opts if c <= tile_cols // 2]
            if smaller:
                tile_cols = max(smaller)

    chunk_cols = chunking(tile_cols)
    needed = vmem_needed(NB, tile_cols, chunk_cols)
    vmem_limit = int(min(max(int(needed * 1.5), 32 * 1024 * 1024), vmem_budget))
    vmem_limit = max(vmem_limit, needed)
    return NB, tile_cols, chunk_cols, vmem_limit


def convffn_pallas(x_nchw, w1, b1, w2, b2, *, allow_bf16_compute=True):
    """x: (N, C, H, W); w1: (C, Ch); b1: (Ch,); w2: (Ch, C); b2: (C,)."""
    N, C, H, W = x_nchw.shape
    Ch = w1.shape[1]
    HW = H * W
    itemsize = jnp.dtype(x_nchw.dtype).itemsize

    vmem_cap = _tpu_vmem_capacity_bytes()
    HW_pad = _round_up(HW, 128)     # lane-aligned -> full (unmasked) stores
    NB, tile_cols, chunk_cols, vmem_limit = _select_tiling(
        N, C, Ch, HW_pad, itemsize, vmem_cap)
    n_row_tiles = N // NB
    n_col_tiles = HW_pad // tile_cols
    n_chunks = tile_cols // chunk_cols

    # Free reshape (no data movement): NCHW already has channels leading.
    x3d = x_nchw.reshape(N, C, HW)
    if HW_pad != HW:
        x3d = jnp.pad(x3d, ((0, 0), (0, 0), (0, HW_pad - HW)))

    # Tiny one-time weight transposes so the kernel contracts over channels
    # while keeping spatial positions on the lane axis.
    w1t = jnp.transpose(w1)          # (Ch, C)
    w2t = jnp.transpose(w2)          # (C, Ch)
    # bf16 MXU input path once the op is compute-bound (large Ch on v5e/v7x);
    # accumulation stays f32 via preferred_element_type.
    use_bf16_mxu = (allow_bf16_compute and x_nchw.dtype == jnp.float32
                    and Ch >= 512)
    if use_bf16_mxu:
        w1t = w1t.astype(jnp.bfloat16)
        w2t = w2t.astype(jnp.bfloat16)
        precision = None
    else:
        precision = (lax.Precision.HIGHEST
                     if x_nchw.dtype == jnp.float32 else None)
    b1_col = b1.reshape(Ch, 1)
    b2_col = b2.reshape(C, 1)

    kernel = functools.partial(
        convffn_kernel, nb=NB, chunk_cols=chunk_cols, n_chunks=n_chunks,
        precision=precision)

    def run(single_buffer_weights):
        const_kw = ({"pipeline_mode": pl.Buffered(1)}
                    if single_buffer_weights else {})
        grid_spec = pltpu.PrefetchScalarGridSpec(
            num_scalar_prefetch=0,
            grid=(n_row_tiles, n_col_tiles),
            in_specs=[
                pl.BlockSpec((NB, C, tile_cols), lambda n, j: (n, 0, j)),   # x
                pl.BlockSpec((Ch, C), lambda n, j: (0, 0), **const_kw),     # W1^T
                pl.BlockSpec((Ch, 1), lambda n, j: (0, 0), **const_kw),     # b1
                pl.BlockSpec((C, Ch), lambda n, j: (0, 0), **const_kw),     # W2^T
                pl.BlockSpec((C, 1), lambda n, j: (0, 0), **const_kw),      # b2
            ],
            out_specs=pl.BlockSpec((NB, C, tile_cols), lambda n, j: (n, 0, j)),
        )
        return pl.pallas_call(
            kernel,
            out_shape=jax.ShapeDtypeStruct((N, C, HW_pad), x_nchw.dtype),
            grid_spec=grid_spec,
            compiler_params=pltpu.CompilerParams(
                dimension_semantics=("parallel", "parallel"),
                vmem_limit_bytes=vmem_limit,
            ),
        )(x3d, w1t, b1_col, w2t, b2_col)

    try:
        out3d = run(True)     # weights/biases single-buffered (constant blocks)
    except Exception:
        out3d = run(False)    # fall back to default double-buffering

    if HW_pad != HW:
        out3d = out3d[:, :, :HW]
    return out3d.reshape(N, C, H, W)


def convffn_reference(x_nchw, w1, b1, w2, b2):
    xf = x_nchw.astype(jnp.float32)
    hp = lax.Precision.HIGHEST
    h = jnp.maximum(jnp.einsum("nchw,cd->ndhw", xf, w1, precision=hp)
                    + b1[None, :, None, None], 0.0)
    y = jnp.maximum(jnp.einsum("ndhw,dc->nchw", h, w2, precision=hp)
                    + b2[None, :, None, None], 0.0)
    return (xf + y).astype(x_nchw.dtype)


if __name__ == "__main__":
    key = jax.random.PRNGKey(0)

    def make_case(k, N, C, H, W, Ch):
        kx, k1, k2, k3, k4 = jax.random.split(k, 5)
        x = jax.random.normal(kx, (N, C, H, W), dtype=jnp.float32)
        bound1 = 1.0 / (C ** 0.5)
        w1 = jax.random.uniform(k1, (C, Ch), jnp.float32, -bound1, bound1)
        b1 = jax.random.uniform(k2, (Ch,), jnp.float32, -bound1, bound1)
        bound2 = 1.0 / (Ch ** 0.5)
        w2 = jax.random.uniform(k3, (Ch, C), jnp.float32, -bound2, bound2)
        b2 = jax.random.uniform(k4, (C,), jnp.float32, -bound2, bound2)
        return x, w1, b1, w2, b2

    cases = [
        (2, 4, 16, 16, 16),    # module default: in_ch2 = in_ch1 * 4
        (4, 4, 16, 16, 16),    # exercises batch-blocked tiles + in-kernel loop
        (1, 4, 32, 32, 256),   # exercises spatial split + in-kernel lane chunking
    ]
    for k, (N, C, H, W, Ch) in zip(jax.random.split(key, len(cases)), cases):
        x, w1, b1, w2, b2 = make_case(k, N, C, H, W, Ch)
        out = jax.block_until_ready(convffn_pallas(x, w1, b1, w2, b2))
        ref = convffn_reference(x, w1, b1, w2, b2)
        assert out.shape == x.shape
        assert jnp.allclose(out, ref, atol=1e-5, rtol=1e-5), (N, C, H, W, Ch)

    print("KERNEL_OK")
</pallas_src>

<mosaic_0001>
module attributes {stable_mosaic.version = 11 : i64} {
  func.func @convffn_kernel(%arg0: i32, %arg1: i32, %arg2: memref<1x4x256xf32, #tpu.memory_space<vmem>>, %arg3: memref<16x4xf32, #tpu.memory_space<vmem>>, %arg4: memref<16x1xf32, #tpu.memory_space<vmem>>, %arg5: memref<4x16xf32, #tpu.memory_space<vmem>>, %arg6: memref<4x1xf32, #tpu.memory_space<vmem>>, %arg7: memref<1x4x256xf32, #tpu.memory_space<vmem>>) attributes {dimension_semantics = [#tpu.dimension_semantics<parallel>, #tpu.dimension_semantics<parallel>], iteration_bounds = array<i64: 2, 1>, scalar_prefetch = 0 : i64, scratch_operands = 0 : i64, tpu.core_type = #tpu.core_type<tc>, window_params = [{transform_indices = @transform_0, window_bounds = array<i64: 1, 4, 256>}, {pipeline_mode = #tpu.pipeline_mode<synchronous>, transform_indices = @transform_1, window_bounds = array<i64: 16, 4>}, {pipeline_mode = #tpu.pipeline_mode<synchronous>, transform_indices = @transform_2, window_bounds = array<i64: 16, 1>}, {pipeline_mode = #tpu.pipeline_mode<synchronous>, transform_indices = @transform_3, window_bounds = array<i64: 4, 16>}, {pipeline_mode = #tpu.pipeline_mode<synchronous>, transform_indices = @transform_4, window_bounds = array<i64: 4, 1>}, {transform_indices = @transform_5, window_bounds = array<i64: 1, 4, 256>}]} {
    %c0 = arith.constant 0 : index
    %c0_0 = arith.constant 0 : index
    %0 = vector.load %arg3[%c0, %c0_0] : memref<16x4xf32, #tpu.memory_space<vmem>>, vector<16x4xf32>
    %c0_1 = arith.constant 0 : index
    %c0_2 = arith.constant 0 : index
    %1 = vector.load %arg5[%c0_1, %c0_2] : memref<4x16xf32, #tpu.memory_space<vmem>>, vector<4x16xf32>
    %c0_3 = arith.constant 0 : index
    %c0_4 = arith.constant 0 : index
    %2 = vector.load %arg4[%c0_3, %c0_4] : memref<16x1xf32, #tpu.memory_space<vmem>>, vector<16x1xf32>
    %c0_5 = arith.constant 0 : index
    %c0_6 = arith.constant 0 : index
    %3 = vector.load %arg6[%c0_5, %c0_6] : memref<4x1xf32, #tpu.memory_space<vmem>>, vector<4x1xf32>
    %c0_7 = arith.constant 0 : index
    %c0_8 = arith.constant 0 : index
    %c0_9 = arith.constant 0 : index
    %4 = vector.load %arg2[%c0_7, %c0_8, %c0_9] : memref<1x4x256xf32, #tpu.memory_space<vmem>>, vector<1x4x256xf32>
    %5 = vector.shape_cast %4 : vector<1x4x256xf32> to vector<4x256xf32>
    %cst = arith.constant dense<0.000000e+00> : vector<16x256xf32>
    %6 = tpu.matmul %0, %5, %cst {dimension_numbers = #tpu.dot_dimension_numbers<[1], [0], [0], [1], [0, 0, 1, 1], [], []>, precision = #tpu.contract_precision<fp32>} : vector<16x4xf32>, vector<4x256xf32>, vector<16x256xf32> -> vector<16x256xf32>
    %7 = vector.broadcast %2 : vector<16x1xf32> to vector<16x256xf32>
    %8 = arith.addf %6, %7 : vector<16x256xf32>
    %cst_10 = arith.constant 0.000000e+00 : f32
    %9 = vector.broadcast %cst_10 : f32 to vector<16x256xf32>
    %10 = arith.maximumf %8, %9 : vector<16x256xf32>
    %cst_11 = arith.constant dense<0.000000e+00> : vector<4x256xf32>
    %11 = tpu.matmul %1, %10, %cst_11 {dimension_numbers = #tpu.dot_dimension_numbers<[1], [0], [0], [1], [0, 0, 1, 1], [], []>, precision = #tpu.contract_precision<fp32>} : vector<4x16xf32>, vector<16x256xf32>, vector<4x256xf32> -> vector<4x256xf32>
    %12 = vector.broadcast %3 : vector<4x1xf32> to vector<4x256xf32>
    %13 = arith.addf %11, %12 : vector<4x256xf32>
    %cst_12 = arith.constant 0.000000e+00 : f32
    %14 = vector.broadcast %cst_12 : f32 to vector<4x256xf32>
    %15 = arith.maximumf %13, %14 : vector<4x256xf32>
    %16 = arith.addf %5, %15 : vector<4x256xf32>
    %c0_13 = arith.constant 0 : index
    %c0_14 = arith.constant 0 : index
    %c0_15 = arith.constant 0 : index
    %17 = vector.load %arg7[%c0_13, %c0_14, %c0_15] : memref<1x4x256xf32, #tpu.memory_space<vmem>>, vector<1x4x256xf32>
    %18 = vector.shape_cast %17 : vector<1x4x256xf32> to vector<4x256xf32>
    %19 = vector.shape_cast %16 : vector<4x256xf32> to vector<1x4x256xf32>
    tpu.vector_store %arg7[%c0_13, %c0_14, %c0_15], %19 {strides = array<i32>} : memref<1x4x256xf32, #tpu.memory_space<vmem>>, vector<1x4x256xf32>,
    return
  }
  func.func @transform_0(%arg0: i32, %arg1: i32) -> (i32, i32, i32) {
    %c0_i32 = arith.constant 0 : i32
    %c0_i32_0 = arith.constant 0 : i32
    return %arg0, %c0_i32, %arg1 : i32, i32, i32
  }
  func.func @transform_1(%arg0: i32, %arg1: i32) -> (i32, i32) {
    %c0_i32 = arith.constant 0 : i32
    %c0_i32_0 = arith.constant 0 : i32
    %c0_i32_1 = arith.constant 0 : i32
    return %c0_i32, %c0_i32_0 : i32, i32
  }
  func.func @transform_2(%arg0: i32, %arg1: i32) -> (i32, i32) {
    %c0_i32 = arith.constant 0 : i32
    %c0_i32_0 = arith.constant 0 : i32
    %c0_i32_1 = arith.constant 0 : i32
    return %c0_i32, %c0_i32_0 : i32, i32
  }
  func.func @transform_3(%arg0: i32, %arg1: i32) -> (i32, i32) {
    %c0_i32 = arith.constant 0 : i32
    %c0_i32_0 = arith.constant 0 : i32
    %c0_i32_1 = arith.constant 0 : i32
    return %c0_i32, %c0_i32_0 : i32, i32
  }
  func.func @transform_4(%arg0: i32, %arg1: i32) -> (i32, i32) {
    %c0_i32 = arith.constant 0 : i32
    %c0_i32_0 = arith.constant 0 : i32
    %c0_i32_1 = arith.constant 0 : i32
    return %c0_i32, %c0_i32_0 : i32, i32
  }
  func.func @transform_5(%arg0: i32, %arg1: i32) -> (i32, i32, i32) {
    %c0_i32 = arith.constant 0 : i32
    %c0_i32_0 = arith.constant 0 : i32
    return %arg0, %c0_i32, %arg1 : i32, i32, i32
  }
}

module attributes {stable_mosaic.version = 11 : i64} {
  func.func @convffn_kernel(%arg0: i32, %arg1: i32, %arg2: memref<1x4x256xf32, #tpu.memory_space<vmem>>, %arg3: memref<16x4xf32, #tpu.memory_space<vmem>>, %arg4: memref<16x1xf32, #tpu.memory_space<vmem>>, %arg5: memref<4x16xf32, #tpu.memory_space<vmem>>, %arg6: memref<4x1xf32, #tpu.memory_space<vmem>>, %arg7: memref<1x4x256xf32, #tpu.memory_space<vmem>>) attributes {dimension_semantics = [#tpu.dimension_semantics<parallel>, #tpu.dimension_semantics<parallel>], iteration_bounds = array<i64: 2, 1>, scalar_prefetch = 0 : i64, scratch_operands = 0 : i64, tpu.core_type = #tpu.core_type<tc>, window_params = [{transform_indices = @transform_0, window_bounds = array<i64: 1, 4, 256>}, {pipeline_mode = #tpu.pipeline_mode<synchronous>, transform_indices = @transform_1, window_bounds = array<i64: 16, 4>}, {pipeline_mode = #tpu.pipeline_mode<synchronous>, transform_indices = @transform_2, window_bounds = array<i64: 16, 1>}, {pipeline_mode = #tpu.pipeline_mode<synchronous>, transform_indices = @transform_3, window_bounds = array<i64: 4, 16>}, {pipeline_mode = #tpu.pipeline_mode<synchronous>, transform_indices = @transform_4, window_bounds = array<i64: 4, 1>}, {transform_indices = @transform_5, window_bounds = array<i64: 1, 4, 256>}]} {
    %c0 = arith.constant 0 : index
    %c0_0 = arith.constant 0 : index
    %0 = vector.load %arg3[%c0, %c0_0] : memref<16x4xf32, #tpu.memory_space<vmem>>, vector<16x4xf32>
    %c0_1 = arith.constant 0 : index
    %c0_2 = arith.constant 0 : index
    %1 = vector.load %arg5[%c0_1, %c0_2] : memref<4x16xf32, #tpu.memory_space<vmem>>, vector<4x16xf32>
    %c0_3 = arith.constant 0 : index
    %c0_4 = arith.constant 0 : index
    %2 = vector.load %arg4[%c0_3, %c0_4] : memref<16x1xf32, #tpu.memory_space<vmem>>, vector<16x1xf32>
    %c0_5 = arith.constant 0 : index
    %c0_6 = arith.constant 0 : index
    %3 = vector.load %arg6[%c0_5, %c0_6] : memref<4x1xf32, #tpu.memory_space<vmem>>, vector<4x1xf32>
    %c0_7 = arith.constant 0 : index
    %c0_8 = arith.constant 0 : index
    %c0_9 = arith.constant 0 : index
    %4 = vector.load %arg2[%c0_7, %c0_8, %c0_9] : memref<1x4x256xf32, #tpu.memory_space<vmem>>, vector<1x4x256xf32>
    %5 = vector.shape_cast %4 : vector<1x4x256xf32> to vector<4x256xf32>
    %cst = arith.constant dense<0.000000e+00> : vector<16x256xf32>
    %6 = tpu.matmul %0, %5, %cst {dimension_numbers = #tpu.dot_dimension_numbers<[1], [0], [0], [1], [0, 0, 1, 1], [], []>, precision = #tpu.contract_precision<fp32>} : vector<16x4xf32>, vector<4x256xf32>, vector<16x256xf32> -> vector<16x256xf32>
    %7 = vector.broadcast %2 : vector<16x1xf32> to vector<16x256xf32>
    %8 = arith.addf %6, %7 : vector<16x256xf32>
    %cst_10 = arith.constant 0.000000e+00 : f32
    %9 = vector.broadcast %cst_10 : f32 to vector<16x256xf32>
    %10 = arith.maximumf %8, %9 : vector<16x256xf32>
    %cst_11 = arith.constant dense<0.000000e+00> : vector<4x256xf32>
    %11 = tpu.matmul %1, %10, %cst_11 {dimension_numbers = #tpu.dot_dimension_numbers<[1], [0], [0], [1], [0, 0, 1, 1], [], []>, precision = #tpu.contract_precision<fp32>} : vector<4x16xf32>, vector<16x256xf32>, vector<4x256xf32> -> vector<4x256xf32>
    %12 = vector.broadcast %3 : vector<4x1xf32> to vector<4x256xf32>
    %13 = arith.addf %11, %12 : vector<4x256xf32>
    %cst_12 = arith.constant 0.000000e+00 : f32
    %14 = vector.broadcast %cst_12 : f32 to vector<4x256xf32>
    %15 = arith.maximumf %13, %14 : vector<4x256xf32>
    %16 = arith.addf %5, %15 : vector<4x256xf32>
    %c0_13 = arith.constant 0 : index
    %c0_14 = arith.constant 0 : index
    %c0_15 = arith.constant 0 : index
    %17 = vector.load %arg7[%c0_13, %c0_14, %c0_15] : memref<1x4x256xf32, #tpu.memory_space<vmem>>, vector<1x4x256xf32>
    %18 = vector.shape_cast %17 : vector<1x4x256xf32> to vector<4x256xf32>
    %19 = vector.shape_cast %16 : vector<4x256xf32> to vector<1x4x256xf32>
    tpu.vector_store %arg7[%c0_13, %c0_14, %c0_15], %19 {strides = array<i32>} : memref<1x4x256xf32, #tpu.memory_space<vmem>>, vector<1x4x256xf32>,
    return
  }
  func.func @transform_0(%arg0: i32, %arg1: i32) -> (i32, i32, i32) {
    %c0_i32 = arith.constant 0 : i32
    %c0_i32_0 = arith.constant 0 : i32
    return %arg0, %c0_i32, %arg1 : i32, i32, i32
  }
  func.func @transform_1(%arg0: i32, %arg1: i32) -> (i32, i32) {
    %c0_i32 = arith.constant 0 : i32
    %c0_i32_0 = arith.constant 0 : i32
    %c0_i32_1 = arith.constant 0 : i32
    return %c0_i32, %c0_i32_0 : i32, i32
  }
  func.func @transform_2(%arg0: i32, %arg1: i32) -> (i32, i32) {
    %c0_i32 = arith.constant 0 : i32
    %c0_i32_0 = arith.constant 0 : i32
    %c0_i32_1 = arith.constant 0 : i32
    return %c0_i32, %c0_i32_0 : i32, i32
  }
  func.func @transform_3(%arg0: i32, %arg1: i32) -> (i32, i32) {
    %c0_i32 = arith.constant 0 : i32
    %c0_i32_0 = arith.constant 0 : i32
    %c0_i32_1 = arith.constant 0 : i32
    return %c0_i32, %c0_i32_0 : i32, i32
  }
  func.func @transform_4(%arg0: i32, %arg1: i32) -> (i32, i32) {
    %c0_i32 = arith.constant 0 : i32
    %c0_i32_0 = arith.constant 0 : i32
    %c0_i32_1 = arith.constant 0 : i32
    return %c0_i32, %c0_i32_0 : i32, i32
  }
  func.func @transform_5(%arg0: i32, %arg1: i32) -> (i32, i32, i32) {
    %c0_i32 = arith.constant 0 : i32
    %c0_i32_0 = arith.constant 0 : i32
    return %arg0, %c0_i32, %arg1 : i32, i32, i32
  }
}

</mosaic_0001>

<llo_original>
// kernel: tpu_custom_call.1
$region0: #{tpu_custom_call.1}
  #allocation0 [shape = 'u32[]', space=smem, size = 0x4, offset = 0x4, fixed_abs, tag = 'smem constant byte address 0x4 - core index']
  #allocation1 [shape = 'u32[144,128]{1,0:T(1,128)}', space=vmem, size = 0x12000, scoped, tag = 'internal scratch']
  %s0 = inlined_call_operand.vmem [shape: f32[2,4,256], index: 0, kind: input, shape index: {}]
  %s1 = inlined_call_operand.vmem [shape: f32[16,4], index: 1, kind: input, shape index: {}]
  %s2 = inlined_call_operand.vmem [shape: f32[16,1], index: 2, kind: input, shape index: {}]
  %s3 = inlined_call_operand.vmem [shape: f32[4,16], index: 3, kind: input, shape index: {}]
  %s4 = inlined_call_operand.vmem [shape: f32[4,1], index: 4, kind: input, shape index: {}]
  %s5 = inlined_call_operand.hbm [shape: f32[2,4,256], index: 5, kind: output, shape index: {}]
  %s6 = sld [smem:[#allocation0]]
  $region53: #{tpu_custom_call.1} parent=0
    _
  %s8 = ssub.s32 1, %s6
  %s9 = scalar_select 0, %s8, %s6
  $region1: #{tpu_custom_call.1} parent=0
    #allocation2 [shape = 'u8[8192]{0}', space=vmem, size = 0x2000, scoped, tag = 'output window, operand 0']
    #allocation3 [shape = 's32[2]{0}', space=sflag, size = 0x8, scoped, tag = 'scoped memory for tpu_custom_call.1']
    %10 = vsyncpa [#allocation3], 0
    %s11 = scalar_lea.sflag [#allocation3], 1
    %12 = vsyncpa %s11, 0
    loop: start=0, step=1, limit=4
    $region2: #{tpu_custom_call.1} parent=1 // loop_pre_header
      _
    $region3: #{tpu_custom_call.1} parent=1 // loop_header
      %s14 = sphi 0, %s18
      %p15 = scmp.ge.s32.totalorder %s14, 4
      %s21 = sphi 0, %s33
      %s22 = sphi 0, %s29
      %s23 = sphi 0, %s21
      %s24 = sphi 0, %s22
      %s25 = sphi 0, %s23
      %s26 = sphi 0, %s24
      %s38 = sphi 0, %s40
      %s41 = sphi 0, %s38
      %s42 = sphi 0, %s41
      %s58 = sphi 0, %s42
      %s62 = sphi 0, %s62
      %s64 = sphi 0, %s62
      %s65 = sphi 0, %s64
      %s79 = sphi 0, %s65
      %s83 = sphi 0, %s83
      %s85 = sphi 0, %s83
      %s86 = sphi 0, %s85
      %s100 = sphi 0, %s86
      %s104 = sphi 0, %s104
      %s106 = sphi 0, %s104
      %s107 = sphi 0, %s106
      %s121 = sphi 0, %s107
      %s125 = sphi 0, %s125
      %s127 = sphi 0, %s125
      %s128 = sphi 0, %s127
      %s142 = sphi 0, %s128
      %s150 = sphi 0, %s152
      %s153 = sphi 0, %s150
      %s154 = sphi 0, %s153
      %s170 = sphi 0, %s154
    $region4: #{tpu_custom_call.1} parent=1 // loop_header_branch
      %17 = sbr.rel (%p15) target = $region8
    $region5: #{tpu_custom_call.1} parent=1 // loop_body
      %s19 = ssub.s32 %s14, 1
      %s20 = ssub.s32 %s14, 2
      %s27 = sadd.s32 1, %s22
      %p28 = scmp.ge.s32.totalorder %s27, 1
      %s29 = scalar_select %p28, 0, %s27
      %s30 = sadd.s32 1, %s21
      %s31 = scalar_select %p28, %s30, %s21
      %p32 = scmp.ge.s32.totalorder %s31, 2
      %s33 = scalar_select %p32, 0, %s31
      %s34 = ssub.s32 %s21, %s33
      %s35 = ssub.s32 %s22, %s29
      %s36 = sor.u32 %s34, %s35
      %p37 = scmp.eq.s32.totalorder %s36, 0
      %s39 = sadd.s32 %s38, 1
      %s40 = scalar_select %p37, %s38, %s39
      %p43 = pneg %p37
      %p44 = scmp.eq.s32.totalorder %s14, 1
      %p45 = por %p43, %p44
      %p46 = scmp.ne.s32.totalorder %s38, %s41
      %p47 = scmp.eq.s32.totalorder %s14, 0
      %p48 = por %p46, %p47
      %p49 = scmp.ne.s32.totalorder %s38, %s41
      %p50 = scmp.eq.s32.totalorder %s19, 1
      %p51 = por %p49, %p50
      %p52 = scmp.ne.s32.totalorder %s41, %s42
      %p53 = scmp.eq.s32.totalorder %s19, 0
      %p54 = por %p52, %p53
      %p55 = scmp.ne.s32.totalorder %s41, %s42
      %p56 = scmp.eq.s32.totalorder %s20, 1
      %p57 = por %p55, %p56
      %p59 = scmp.ne.s32.totalorder %s42, %s58
      %p60 = scmp.eq.s32.totalorder %s20, 0
      %p61 = por %p59, %p60
      %s63 = sadd.s32 %s62, 1
      %p66 = scmp.eq.s32.totalorder %s14, 1
      %p67 = scmp.ne.s32.totalorder %s62, %s64
      %p68 = scmp.eq.s32.totalorder %s14, 0
      %p69 = por %p67, %p68
      %p70 = scmp.ne.s32.totalorder %s62, %s64
      %p71 = scmp.eq.s32.totalorder %s19, 1
      %p72 = por %p70, %p71
      %p73 = scmp.ne.s32.totalorder %s64, %s65
      %p74 = scmp.eq.s32.totalorder %s19, 0
      %p75 = por %p73, %p74
      %p76 = scmp.ne.s32.totalorder %s64, %s65
      %p77 = scmp.eq.s32.totalorder %s20, 1
      %p78 = por %p76, %p77
      %p80 = scmp.ne.s32.totalorder %s65, %s79
      %p81 = scmp.eq.s32.totalorder %s20, 0
      %p82 = por %p80, %p81
      %s84 = sadd.s32 %s83, 1
      %p87 = scmp.eq.s32.totalorder %s14, 1
      %p88 = scmp.ne.s32.totalorder %s83, %s85
      %p89 = scmp.eq.s32.totalorder %s14, 0
      %p90 = por %p88, %p89
      %p91 = scmp.ne.s32.totalorder %s83, %s85
      %p92 = scmp.eq.s32.totalorder %s19, 1
      %p93 = por %p91, %p92
      %p94 = scmp.ne.s32.totalorder %s85, %s86
      %p95 = scmp.eq.s32.totalorder %s19, 0
      %p96 = por %p94, %p95
      %p97 = scmp.ne.s32.totalorder %s85, %s86
      %p98 = scmp.eq.s32.totalorder %s20, 1
      %p99 = por %p97, %p98
      %p101 = scmp.ne.s32.totalorder %s86, %s100
      %p102 = scmp.eq.s32.totalorder %s20, 0
      %p103 = por %p101, %p102
      %s105 = sadd.s32 %s104, 1
      %p108 = scmp.eq.s32.totalorder %s14, 1
      %p109 = scmp.ne.s32.totalorder %s104, %s106
      %p110 = scmp.eq.s32.totalorder %s14, 0
      %p111 = por %p109, %p110
      %p112 = scmp.ne.s32.totalorder %s104, %s106
      %p113 = scmp.eq.s32.totalorder %s19, 1
      %p114 = por %p112, %p113
      %p115 = scmp.ne.s32.totalorder %s106, %s107
      %p116 = scmp.eq.s32.totalorder %s19, 0
      %p117 = por %p115, %p116
      %p118 = scmp.ne.s32.totalorder %s106, %s107
      %p119 = scmp.eq.s32.totalorder %s20, 1
      %p120 = por %p118, %p119
      %p122 = scmp.ne.s32.totalorder %s107, %s121
      %p123 = scmp.eq.s32.totalorder %s20, 0
      %p124 = por %p122, %p123
      %s126 = sadd.s32 %s125, 1
      %p129 = scmp.eq.s32.totalorder %s14, 1
      %p130 = scmp.ne.s32.totalorder %s125, %s127
      %p131 = scmp.eq.s32.totalorder %s14, 0
      %p132 = por %p130, %p131
      %p133 = scmp.ne.s32.totalorder %s125, %s127
      %p134 = scmp.eq.s32.totalorder %s19, 1
      %p135 = por %p133, %p134
      %p136 = scmp.ne.s32.totalorder %s127, %s128
      %p137 = scmp.eq.s32.totalorder %s19, 0
      %p138 = por %p136, %p137
      %p139 = scmp.ne.s32.totalorder %s127, %s128
      %p140 = scmp.eq.s32.totalorder %s20, 1
      %p141 = por %p139, %p140
      %p143 = scmp.ne.s32.totalorder %s128, %s142
      %p144 = scmp.eq.s32.totalorder %s20, 0
      %p145 = por %p143, %p144
      %s146 = ssub.s32 %s21, %s33
      %s147 = ssub.s32 %s22, %s29
      %s148 = sor.u32 %s146, %s147
      %p149 = scmp.eq.s32.totalorder %s148, 0
      %s151 = sadd.s32 %s150, 1
      %s152 = scalar_select %p149, %s150, %s151
      %p155 = pneg %p149
      %p156 = scmp.eq.s32.totalorder %s14, 1
      %p157 = por %p155, %p156
      %p158 = scmp.ne.s32.totalorder %s150, %s153
      %p159 = scmp.eq.s32.totalorder %s14, 0
      %p160 = por %p158, %p159
      %p161 = scmp.ne.s32.totalorder %s150, %s153
      %p162 = scmp.eq.s32.totalorder %s19, 1
      %p163 = por %p161, %p162
      %p164 = scmp.ne.s32.totalorder %s153, %s154
      %p165 = scmp.eq.s32.totalorder %s19, 0
      %p166 = por %p164, %p165
      %p167 = scmp.ne.s32.totalorder %s153, %s154
      %p168 = scmp.eq.s32.totalorder %s20, 1
      %p169 = por %p167, %p168
      %p171 = scmp.ne.s32.totalorder %s154, %s170
      %p172 = scmp.eq.s32.totalorder %s20, 0
      %p173 = por %p171, %p172
      %p174 = scmp.le.s32.totalorder 1, %s14
      %p175 = scmp.lt.s32.totalorder %s14, 3
      %p176 = pnand %p174, %p175
      %p177 = pneg %p176
      // Predicated region
      $region9: #{tpu_custom_call.1} parent=5 // pred_check
        _
      $region10: #{tpu_custom_call.1} parent=5 // pred_check_branch
        %179 = sbr.rel (%p176) target = $region12
      $region11: #{tpu_custom_call.1} parent=5 // pred_region
        %s180 = ssub.s32 %s14, 1
        // Predicated region
        $region13: #{tpu_custom_call.1} parent=11 // pred_check
          %p181 = pneg %p75
        $region14: #{tpu_custom_call.1} parent=11 // pred_check_branch
          %183 = sbr.rel (%p181) target = $region16
        $region15: #{tpu_custom_call.1} parent=11 // pred_region
          _
        $region16: #{tpu_custom_call.1} parent=11 // pred_fallthru
          _
        // Predicated region
        $region17: #{tpu_custom_call.1} parent=11 // pred_check
          %p184 = pneg %p96
        $region18: #{tpu_custom_call.1} parent=11 // pred_check_branch
          %186 = sbr.rel (%p184) target = $region20
        $region19: #{tpu_custom_call.1} parent=11 // pred_region
          _
        $region20: #{tpu_custom_call.1} parent=11 // pred_fallthru
          _
        // Predicated region
        $region21: #{tpu_custom_call.1} parent=11 // pred_check
          %p187 = pneg %p117
        $region22: #{tpu_custom_call.1} parent=11 // pred_check_branch
          %189 = sbr.rel (%p187) target = $region24
        $region23: #{tpu_custom_call.1} parent=11 // pred_region
          _
        $region24: #{tpu_custom_call.1} parent=11 // pred_fallthru
          _
        // Predicated region
        $region25: #{tpu_custom_call.1} parent=11 // pred_check
          %p190 = pneg %p138
        $region26: #{tpu_custom_call.1} parent=11 // pred_check_branch
          %192 = sbr.rel (%p190) target = $region28
        $region27: #{tpu_custom_call.1} parent=11 // pred_region
          _
        $region28: #{tpu_custom_call.1} parent=11 // pred_fallthru
          _
      $region12: #{tpu_custom_call.1} parent=5 // pred_fallthru
        _
      %p193 = scmp.lt.s32.totalorder %s14, 2
      // Predicated region
      $region29: #{tpu_custom_call.1} parent=5 // pred_check
        %p194 = pneg %p193
      $region30: #{tpu_custom_call.1} parent=5 // pred_check_branch
        %196 = sbr.rel (%p194) target = $region32
      $region31: #{tpu_custom_call.1} parent=5 // pred_region
        // Predicated region
        $region33: #{tpu_custom_call.1} parent=31 // pred_check
          %p197 = pneg %p48
        $region34: #{tpu_custom_call.1} parent=31 // pred_check_branch
          %199 = sbr.rel (%p197) target = $region36
        $region35: #{tpu_custom_call.1} parent=31 // pred_region
          %s200 = smul.u32 2, %s22
          %p201 = scmp.lt.s32.totalorder %s21, 1
          %s202 = scalar_select %p201, %s21, 1
          %p203 = scmp.lt.s32.totalorder %s200, 1
          %s204 = scalar_select %p203, %s200, 1
          %s205 = smul.addr %s202, 2
          %s206 = sadd.s32 %s204, %s205
          %s207 = smul.addr %s206, 4
          %s208 = scalar_lea.vmem %s0, %s207
          %s209 = smul.u32 2, %s22
        $region36: #{tpu_custom_call.1} parent=31 // pred_fallthru
          _
      $region32: #{tpu_custom_call.1} parent=5 // pred_fallthru
        _
      %p210 = scmp.le.s32.totalorder 1, %s14
      %p211 = scmp.lt.s32.totalorder %s14, 3
      %p212 = pnand %p210, %p211
      %p213 = pneg %p212
      // Predicated region
      $region37: #{tpu_custom_call.1} parent=5 // pred_check
        _
      $region38: #{tpu_custom_call.1} parent=5 // pred_check_branch
        %215 = sbr.rel (%p212) target = $region40
      $region39: #{tpu_custom_call.1} parent=5 // pred_region
        %s216 = ssub.s32 %s14, 1
        %s217 = smul.u32 2, %s24
        %p218 = scmp.lt.s32.totalorder %s23, 1
        %s219 = scalar_select %p218, %s23, 1
        %p220 = scmp.lt.s32.totalorder %s217, 1
        %s221 = scalar_select %p220, %s217, 1
        %s222 = smul.addr %s219, 2
        %s223 = sadd.s32 %s221, %s222
        %s224 = smul.addr %s223, 4
        %s225 = scalar_lea.vmem %s0, %s224
        %p226 = pneg %p54
        %p227 = pneg %p51
        %p228 = pneg %p75
        %p229 = pneg %p72
        %p230 = pneg %p96
        %p231 = pneg %p93
        %p232 = pneg %p117
        %p233 = pneg %p114
        %p234 = pneg %p138
        %p235 = pneg %p135
        %p236 = pneg %p166
        %p237 = pneg %p163
        %s238 = sand.u32 %s153, 1
        %s239 = scalar_lea.sflag [#allocation3], %s238
        %s240 = sand.u32 %s153, 1
        %s241 = smul.addr %s240, 8
        %s242 = scalar_lea.vmem [#allocation2], %s241
        %s243 = smul.u32 2, %s24
        %p244 = scmp.lt.s32.totalorder %s23, 1
        %s245 = scalar_select %p244, %s23, 1
        %p246 = scmp.lt.s32.totalorder %s243, 1
        %s247 = scalar_select %p246, %s243, 1
        %s248 = smul.addr %s245, 2
        %s249 = sadd.s32 %s247, %s248
        %s250 = smul.addr %s249, 4
        %s251 = scalar_lea.vmem %s0, %s250
        %s252 = smul.u32 2, %s24
        %s253 = smul.u32 2, %s24
        %v254 = vld [vmem:[%s1] sm:$0xff]
        %v255 = vld [vmem:[%s1 + $0x8] sm:$0xff]
        %v256 = vld [vmem:[%s3] sm:$0xf]
        %v257 = vld [vmem:[%s2] sm:$0xff]
        %v258 = vld [vmem:[%s2 + $0x8] sm:$0xff]
        %v259 = vld [vmem:[%s4] sm:$0xf]
        %v260 = vld [vmem:[%s251] sm:$0xff]
        %262 = vset.pattern.permute.xlu0 0
        %263 = vperm.xlu0 %262, %v257
        %v264 = vpop.permute.xlu0 %263
        %267 = vset.pattern.permute.xlu0 0
        %268 = vperm.xlu0 %267, %v258
        %v269 = vpop.permute.xlu0 %268
        %v272 = vcombine.high %v260, %v260
        %vm273 = vcmask 31744
        %v275 = vsel %vm273, %v254, 0
        %v278 = vsel %vm273, %v255, 0
        %vm280 = vcmask 1043456
        %v281 = vsel %vm280, %v260, 0
        %v283 = vsel %vm280, %v272, 0
        %285 = vmatprep.subr.mxu0 0.0
        %286 = vmatpush1.msra.mxu0 0.0
        %287 = vmatprep.subr.mxu0 0.0
        %288 = vmatpush1.msra.mxu0 0.0
        %289 = vmatprep.subr.mxu0 0.0
        %290 = vmatpush1.msra.mxu0 0.0
        %291 = vmatprep.subr.mxu0 0.0
        %292 = vmatpush1.msra.mxu0 0.0
        %293 = vmatprep.subr.mxu0 0.0
        %294 = vmatpush1.msra.mxu0 0.0
        %295 = vmatprep.subr.mxu0 0.0
        %296 = vmatpush1.msra.mxu0 0.0
        %297 = vmatprep.subr.mxu0 0.0
        %298 = vmatpush1.msra.mxu0 0.0
        %299 = vmatprep.subr.mxu0 0.0
        %300 = vmatpush1.msra.mxu0 0.0
        %301 = vmatprep.subr.mxu0 0.0
        %302 = vmatpush1.msra.mxu0 0.0
        %303 = vmatprep.subr.mxu0 0.0
        %304 = vmatpush1.msra.mxu0 0.0
        %305 = vmatprep.subr.mxu0 0.0
        %306 = vmatpush1.msra.mxu0 0.0
        %307 = vmatprep.subr.mxu0 0.0
        %308 = vmatpush1.msra.mxu0 0.0
        %309 = vmatprep.subr.mxu0 0.0
        %310 = vmatpush1.msra.mxu0 0.0
        %311 = vmatprep.subr.mxu0 0.0
        %312 = vmatpush1.msra.mxu0 0.0
        %313 = vmatprep.subr.mxu0 0.0
        %314 = vmatpush1.msra.mxu0 0.0
        %v315 = vand.u32 %v283, 4294901760
        %316 = vmatprep.subr.mxu0 %v315
        %v317 = vand.u32 %v281, 4294901760
        %318 = vmatpush1.msra.mxu0 %v317
        %319 = vmatprep.subr.mxu0 0.0
        %320 = vmatpush2.msra.mxu0 0.0
        %321 = vmatprep.subr.mxu0 0.0
        %322 = vmatpush2.msra.mxu0 0.0
        %323 = vmatprep.subr.mxu0 0.0
        %324 = vmatpush2.msra.mxu0 0.0
        %325 = vmatprep.subr.mxu0 0.0
        %326 = vmatpush2.msra.mxu0 0.0
        %327 = vmatprep.subr.mxu0 0.0
        %328 = vmatpush2.msra.mxu0 0.0
        %329 = vmatprep.subr.mxu0 0.0
        %330 = vmatpush2.msra.mxu0 0.0
        %331 = vmatprep.subr.mxu0 0.0
        %332 = vmatpush2.msra.mxu0 0.0
        %333 = vmatprep.subr.mxu0 0.0
        %334 = vmatpush2.msra.mxu0 0.0
        %335 = vmatprep.subr.mxu0 0.0
        %336 = vmatpush2.msra.mxu0 0.0
        %337 = vmatprep.subr.mxu0 0.0
        %338 = vmatpush2.msra.mxu0 0.0
        %339 = vmatprep.subr.mxu0 0.0
        %340 = vmatpush2.msra.mxu0 0.0
        %341 = vmatprep.subr.mxu0 0.0
        %342 = vmatpush2.msra.mxu0 0.0
        %343 = vmatprep.subr.mxu0 0.0
        %344 = vmatpush2.msra.mxu0 0.0
        %345 = vmatprep.subr.mxu0 0.0
        %346 = vmatpush2.msra.mxu0 0.0
        %347 = vmatprep.subr.mxu0 0.0
        %348 = vmatpush2.msra.mxu0 0.0
        %349 = vmatprep.subr.mxu0 0.0
        %350 = vmatpush2.msra.mxu0 0.0
        %351 = vmatprep.mubr.f32.mxu0 0.0
        %v352 = vand.u32 %v275, 4294901760
        %v353 = vsub.f32 %v275, %v352
        %v354 = vand.u32 %v353, 4294901760
        %v355 = vsub.f32 %v353, %v354
        %v356 = vand.u32 %v355, 4294901760
        %357 = vmatmul.mubr.f32.gmra.mxu0 %v356
        %v358 = vpop.f32.mrf.mxu0
        %v359 = vadd.f32 %v264, %v358
        %v360 = vpop.f32.mrf.mxu0
        %v361 = vadd.f32 %v264, %v360
        %362 = vmatprep.mubr.f32.mxu0 0.0
        %v363 = vand.u32 %v278, 4294901760
        %v364 = vsub.f32 %v278, %v363
        %v365 = vand.u32 %v364, 4294901760
        %v366 = vsub.f32 %v364, %v365
        %v367 = vand.u32 %v366, 4294901760
        %368 = vmatmul.mubr.f32.gmra.mxu0 %v367
        %v369 = vpop.f32.mrf.mxu0
        %v370 = vadd.f32 %v269, %v369
        %v371 = vpop.f32.mrf.mxu0
        %v372 = vadd.f32 %v269, %v371
        %373 = vdwg.mxu0
        %374 = vmatprep.subr.mxu0 0.0
        %375 = vmatpush1.msra.mxu0 0.0
        %376 = vmatprep.subr.mxu0 0.0
        %377 = vmatpush1.msra.mxu0 0.0
        %378 = vmatprep.subr.mxu0 0.0
        %379 = vmatpush1.msra.mxu0 0.0
        %380 = vmatprep.subr.mxu0 0.0
        %381 = vmatpush1.msra.mxu0 0.0
        %382 = vmatprep.subr.mxu0 0.0
        %383 = vmatpush1.msra.mxu0 0.0
        %384 = vmatprep.subr.mxu0 0.0
        %385 = vmatpush1.msra.mxu0 0.0
        %386 = vmatprep.subr.mxu0 0.0
        %387 = vmatpush1.msra.mxu0 0.0
        %388 = vmatprep.subr.mxu0 0.0
        %389 = vmatpush1.msra.mxu0 0.0
        %390 = vmatprep.subr.mxu0 0.0
        %391 = vmatpush1.msra.mxu0 0.0
        %392 = vmatprep.subr.mxu0 0.0
        %393 = vmatpush1.msra.mxu0 0.0
        %394 = vmatprep.subr.mxu0 0.0
        %395 = vmatpush1.msra.mxu0 0.0
        %396 = vmatprep.subr.mxu0 0.0
        %397 = vmatpush1.msra.mxu0 0.0
        %398 = vmatprep.subr.mxu0 0.0
        %399 = vmatpush1.msra.mxu0 0.0
        %400 = vmatprep.subr.mxu0 0.0
        %401 = vmatpush1.msra.mxu0 0.0
        %402 = vmatprep.subr.mxu0 0.0
        %403 = vmatpush1.msra.mxu0 0.0
        %v404 = vand.u32 %v283, 4294901760
        %v405 = vsub.f32 %v283, %v404
        %v406 = vand.u32 %v405, 4294901760
        %v407 = vsub.f32 %v405, %v406
        %v408 = vand.u32 %v407, 4294901760
        %409 = vmatprep.subr.mxu0 %v408
        %v410 = vand.u32 %v281, 4294901760
        %v411 = vsub.f32 %v281, %v410
        %v412 = vand.u32 %v411, 4294901760
        %v413 = vsub.f32 %v411, %v412
        %v414 = vand.u32 %v413, 4294901760
        %415 = vmatpush1.msra.mxu0 %v414
        %416 = vmatprep.subr.mxu0 0.0
        %417 = vmatpush2.msra.mxu0 0.0
        %418 = vmatprep.subr.mxu0 0.0
        %419 = vmatpush2.msra.mxu0 0.0
        %420 = vmatprep.subr.mxu0 0.0
        %421 = vmatpush2.msra.mxu0 0.0
        %422 = vmatprep.subr.mxu0 0.0
        %423 = vmatpush2.msra.mxu0 0.0
        %424 = vmatprep.subr.mxu0 0.0
        %425 = vmatpush2.msra.mxu0 0.0
        %426 = vmatprep.subr.mxu0 0.0
        %427 = vmatpush2.msra.mxu0 0.0
        %428 = vmatprep.subr.mxu0 0.0
        %429 = vmatpush2.msra.mxu0 0.0
        %430 = vmatprep.subr.mxu0 0.0
        %431 = vmatpush2.msra.mxu0 0.0
        %432 = vmatprep.subr.mxu0 0.0
        %433 = vmatpush2.msra.mxu0 0.0
        %434 = vmatprep.subr.mxu0 0.0
        %435 = vmatpush2.msra.mxu0 0.0
        %436 = vmatprep.subr.mxu0 0.0
        %437 = vmatpush2.msra.mxu0 0.0
        %438 = vmatprep.subr.mxu0 0.0
        %439 = vmatpush2.msra.mxu0 0.0
        %440 = vmatprep.subr.mxu0 0.0
        %441 = vmatpush2.msra.mxu0 0.0
        %442 = vmatprep.subr.mxu0 0.0
        %443 = vmatpush2.msra.mxu0 0.0
        %444 = vmatprep.subr.mxu0 0.0
        %445 = vmatpush2.msra.mxu0 0.0
        %446 = vmatprep.subr.mxu0 0.0
        %447 = vmatpush2.msra.mxu0 0.0
        %448 = vmatprep.mubr.f32.mxu0 0.0
        %v449 = vand.u32 %v275, 4294901760
        %450 = vmatmul.mubr.f32.gmra.mxu0 %v449
        %v451 = vpop.f32.mrf.mxu0
        %v452 = vadd.f32 %v359, %v451
        %v453 = vpop.f32.mrf.mxu0
        %v454 = vadd.f32 %v361, %v453
        %455 = vmatprep.mubr.f32.mxu0 0.0
        %v456 = vand.u32 %v278, 4294901760
        %457 = vmatmul.mubr.f32.gmra.mxu0 %v456
        %v458 = vpop.f32.mrf.mxu0
        %v459 = vadd.f32 %v370, %v458
        %v460 = vpop.f32.mrf.mxu0
        %v461 = vadd.f32 %v372, %v460
        %462 = vdwg.mxu0
        %463 = vmatprep.subr.mxu0 0.0
        %464 = vmatpush1.msra.mxu0 0.0
        %465 = vmatprep.subr.mxu0 0.0
        %466 = vmatpush1.msra.mxu0 0.0
        %467 = vmatprep.subr.mxu0 0.0
        %468 = vmatpush1.msra.mxu0 0.0
        %469 = vmatprep.subr.mxu0 0.0
        %470 = vmatpush1.msra.mxu0 0.0
        %471 = vmatprep.subr.mxu0 0.0
        %472 = vmatpush1.msra.mxu0 0.0
        %473 = vmatprep.subr.mxu0 0.0
        %474 = vmatpush1.msra.mxu0 0.0
        %475 = vmatprep.subr.mxu0 0.0
        %476 = vmatpush1.msra.mxu0 0.0
        %477 = vmatprep.subr.mxu0 0.0
        %478 = vmatpush1.msra.mxu0 0.0
        %479 = vmatprep.subr.mxu0 0.0
        %480 = vmatpush1.msra.mxu0 0.0
        %481 = vmatprep.subr.mxu0 0.0
        %482 = vmatpush1.msra.mxu0 0.0
        %483 = vmatprep.subr.mxu0 0.0
        %484 = vmatpush1.msra.mxu0 0.0
        %485 = vmatprep.subr.mxu0 0.0
        %486 = vmatpush1.msra.mxu0 0.0
        %487 = vmatprep.subr.mxu0 0.0
        %488 = vmatpush1.msra.mxu0 0.0
        %489 = vmatprep.subr.mxu0 0.0
        %490 = vmatpush1.msra.mxu0 0.0
        %491 = vmatprep.subr.mxu0 0.0
        %492 = vmatpush1.msra.mxu0 0.0
        %v493 = vand.u32 %v283, 4294901760
        %v494 = vsub.f32 %v283, %v493
        %495 = vmatprep.subr.mxu0 %v494
        %v496 = vand.u32 %v281, 4294901760
        %v497 = vsub.f32 %v281, %v496
        %498 = vmatpush1.msra.mxu0 %v497
        %499 = vmatprep.subr.mxu0 0.0
        %500 = vmatpush2.msra.mxu0 0.0
        %501 = vmatprep.subr.mxu0 0.0
        %502 = vmatpush2.msra.mxu0 0.0
        %503 = vmatprep.subr.mxu0 0.0
        %504 = vmatpush2.msra.mxu0 0.0
        %505 = vmatprep.subr.mxu0 0.0
        %506 = vmatpush2.msra.mxu0 0.0
        %507 = vmatprep.subr.mxu0 0.0
        %508 = vmatpush2.msra.mxu0 0.0
        %509 = vmatprep.subr.mxu0 0.0
        %510 = vmatpush2.msra.mxu0 0.0
        %511 = vmatprep.subr.mxu0 0.0
        %512 = vmatpush2.msra.mxu0 0.0
        %513 = vmatprep.subr.mxu0 0.0
        %514 = vmatpush2.msra.mxu0 0.0
        %515 = vmatprep.subr.mxu0 0.0
        %516 = vmatpush2.msra.mxu0 0.0
        %517 = vmatprep.subr.mxu0 0.0
        %518 = vmatpush2.msra.mxu0 0.0
        %519 = vmatprep.subr.mxu0 0.0
        %520 = vmatpush2.msra.mxu0 0.0
        %521 = vmatprep.subr.mxu0 0.0
        %522 = vmatpush2.msra.mxu0 0.0
        %523 = vmatprep.subr.mxu0 0.0
        %524 = vmatpush2.msra.mxu0 0.0
        %525 = vmatprep.subr.mxu0 0.0
        %526 = vmatpush2.msra.mxu0 0.0
        %527 = vmatprep.subr.mxu0 0.0
        %528 = vmatpush2.msra.mxu0 0.0
        %529 = vmatprep.subr.mxu0 0.0
        %530 = vmatpush2.msra.mxu0 0.0
        %531 = vmatprep.mubr.f32.mxu0 0.0
        %v532 = vand.u32 %v275, 4294901760
        %v533 = vsub.f32 %v275, %v532
        %534 = vmatmul.mubr.f32.gmra.mxu0 %v533
        %v535 = vpop.f32.mrf.mxu0
        %v536 = vadd.f32 %v452, %v535
        %v537 = vpop.f32.mrf.mxu0
        %v538 = vadd.f32 %v454, %v537
        %539 = vmatprep.mubr.f32.mxu0 0.0
        %v540 = vand.u32 %v278, 4294901760
        %v541 = vsub.f32 %v278, %v540
        %542 = vmatmul.mubr.f32.gmra.mxu0 %v541
        %v543 = vpop.f32.mrf.mxu0
        %v544 = vadd.f32 %v459, %v543
        %v545 = vpop.f32.mrf.mxu0
        %v546 = vadd.f32 %v461, %v545
        %547 = vdwg.mxu0
        %548 = vmatprep.subr.mxu0 0.0
        %549 = vmatpush1.msra.mxu0 0.0
        %550 = vmatprep.subr.mxu0 0.0
        %551 = vmatpush1.msra.mxu0 0.0
        %552 = vmatprep.subr.mxu0 0.0
        %553 = vmatpush1.msra.mxu0 0.0
        %554 = vmatprep.subr.mxu0 0.0
        %555 = vmatpush1.msra.mxu0 0.0
        %556 = vmatprep.subr.mxu0 0.0
        %557 = vmatpush1.msra.mxu0 0.0
        %558 = vmatprep.subr.mxu0 0.0
        %559 = vmatpush1.msra.mxu0 0.0
        %560 = vmatprep.subr.mxu0 0.0
        %561 = vmatpush1.msra.mxu0 0.0
        %562 = vmatprep.subr.mxu0 0.0
        %563 = vmatpush1.msra.mxu0 0.0
        %564 = vmatprep.subr.mxu0 0.0
        %565 = vmatpush1.msra.mxu0 0.0
        %566 = vmatprep.subr.mxu0 0.0
        %567 = vmatpush1.msra.mxu0 0.0
        %568 = vmatprep.subr.mxu0 0.0
        %569 = vmatpush1.msra.mxu0 0.0
        %570 = vmatprep.subr.mxu0 0.0
        %571 = vmatpush1.msra.mxu0 0.0
        %572 = vmatprep.subr.mxu0 0.0
        %573 = vmatpush1.msra.mxu0 0.0
        %574 = vmatprep.subr.mxu0 0.0
        %575 = vmatpush1.msra.mxu0 0.0
        %576 = vmatprep.subr.mxu0 0.0
        %577 = vmatpush1.msra.mxu0 0.0
        %v578 = vand.u32 %v283, 4294901760
        %579 = vmatprep.subr.mxu0 %v578
        %v580 = vand.u32 %v281, 4294901760
        %581 = vmatpush1.msra.mxu0 %v580
        %582 = vmatprep.subr.mxu0 0.0
        %583 = vmatpush2.msra.mxu0 0.0
        %584 = vmatprep.subr.mxu0 0.0
        %585 = vmatpush2.msra.mxu0 0.0
        %586 = vmatprep.subr.mxu0 0.0
        %587 = vmatpush2.msra.mxu0 0.0
        %588 = vmatprep.subr.mxu0 0.0
        %589 = vmatpush2.msra.mxu0 0.0
        %590 = vmatprep.subr.mxu0 0.0
        %591 = vmatpush2.msra.mxu0 0.0
        %592 = vmatprep.subr.mxu0 0.0
        %593 = vmatpush2.msra.mxu0 0.0
        %594 = vmatprep.subr.mxu0 0.0
        %595 = vmatpush2.msra.mxu0 0.0
        %596 = vmatprep.subr.mxu0 0.0
        %597 = vmatpush2.msra.mxu0 0.0
        %598 = vmatprep.subr.mxu0 0.0
        %599 = vmatpush2.msra.mxu0 0.0
        %600 = vmatprep.subr.mxu0 0.0
        %601 = vmatpush2.msra.mxu0 0.0
        %602 = vmatprep.subr.mxu0 0.0
        %603 = vmatpush2.msra.mxu0 0.0
        %604 = vmatprep.subr.mxu0 0.0
        %605 = vmatpush2.msra.mxu0 0.0
        %606 = vmatprep.subr.mxu0 0.0
        %607 = vmatpush2.msra.mxu0 0.0
        %608 = vmatprep.subr.mxu0 0.0
        %609 = vmatpush2.msra.mxu0 0.0
        %610 = vmatprep.subr.mxu0 0.0
        %611 = vmatpush2.msra.mxu0 0.0
        %612 = vmatprep.subr.mxu0 0.0
        %613 = vmatpush2.msra.mxu0 0.0
        %614 = vmatprep.mubr.f32.mxu0 0.0
        %v615 = vand.u32 %v275, 4294901760
        %v616 = vsub.f32 %v275, %v615
        %v617 = vand.u32 %v616, 4294901760
        %618 = vmatmul.mubr.f32.gmra.mxu0 %v617
        %v619 = vpop.f32.mrf.mxu0
        %v620 = vadd.f32 %v536, %v619
        %v621 = vpop.f32.mrf.mxu0
        %v622 = vadd.f32 %v538, %v621
        %623 = vmatprep.mubr.f32.mxu0 0.0
        %v624 = vand.u32 %v278, 4294901760
        %v625 = vsub.f32 %v278, %v624
        %v626 = vand.u32 %v625, 4294901760
        %627 = vmatmul.mubr.f32.gmra.mxu0 %v626
        %v628 = vpop.f32.mrf.mxu0
        %v629 = vadd.f32 %v544, %v628
        %v630 = vpop.f32.mrf.mxu0
        %v631 = vadd.f32 %v546, %v630
        %632 = vdwg.mxu0
        %633 = vmatprep.subr.mxu0 0.0
        %634 = vmatpush1.msra.mxu0 0.0
        %635 = vmatprep.subr.mxu0 0.0
        %636 = vmatpush1.msra.mxu0 0.0
        %637 = vmatprep.subr.mxu0 0.0
        %638 = vmatpush1.msra.mxu0 0.0
        %639 = vmatprep.subr.mxu0 0.0
        %640 = vmatpush1.msra.mxu0 0.0
        %641 = vmatprep.subr.mxu0 0.0
        %642 = vmatpush1.msra.mxu0 0.0
        %643 = vmatprep.subr.mxu0 0.0
        %644 = vmatpush1.msra.mxu0 0.0
        %645 = vmatprep.subr.mxu0 0.0
        %646 = vmatpush1.msra.mxu0 0.0
        %647 = vmatprep.subr.mxu0 0.0
        %648 = vmatpush1.msra.mxu0 0.0
        %649 = vmatprep.subr.mxu0 0.0
        %650 = vmatpush1.msra.mxu0 0.0
        %651 = vmatprep.subr.mxu0 0.0
        %652 = vmatpush1.msra.mxu0 0.0
        %653 = vmatprep.subr.mxu0 0.0
        %654 = vmatpush1.msra.mxu0 0.0
        %655 = vmatprep.subr.mxu0 0.0
        %656 = vmatpush1.msra.mxu0 0.0
        %657 = vmatprep.subr.mxu0 0.0
        %658 = vmatpush1.msra.mxu0 0.0
        %659 = vmatprep.subr.mxu0 0.0
        %660 = vmatpush1.msra.mxu0 0.0
        %661 = vmatprep.subr.mxu0 0.0
        %662 = vmatpush1.msra.mxu0 0.0
        %v663 = vand.u32 %v283, 4294901760
        %v664 = vsub.f32 %v283, %v663
        %v665 = vand.u32 %v664, 4294901760
        %666 = vmatprep.subr.mxu0 %v665
        %v667 = vand.u32 %v281, 4294901760
        %v668 = vsub.f32 %v281, %v667
        %v669 = vand.u32 %v668, 4294901760
        %670 = vmatpush1.msra.mxu0 %v669
        %671 = vmatprep.subr.mxu0 0.0
        %672 = vmatpush2.msra.mxu0 0.0
        %673 = vmatprep.subr.mxu0 0.0
        %674 = vmatpush2.msra.mxu0 0.0
        %675 = vmatprep.subr.mxu0 0.0
        %676 = vmatpush2.msra.mxu0 0.0
        %677 = vmatprep.subr.mxu0 0.0
        %678 = vmatpush2.msra.mxu0 0.0
        %679 = vmatprep.subr.mxu0 0.0
        %680 = vmatpush2.msra.mxu0 0.0
        %681 = vmatprep.subr.mxu0 0.0
        %682 = vmatpush2.msra.mxu0 0.0
        %683 = vmatprep.subr.mxu0 0.0
        %684 = vmatpush2.msra.mxu0 0.0
        %685 = vmatprep.subr.mxu0 0.0
        %686 = vmatpush2.msra.mxu0 0.0
        %687 = vmatprep.subr.mxu0 0.0
        %688 = vmatpush2.msra.mxu0 0.0
        %689 = vmatprep.subr.mxu0 0.0
        %690 = vmatpush2.msra.mxu0 0.0
        %691 = vmatprep.subr.mxu0 0.0
        %692 = vmatpush2.msra.mxu0 0.0
        %693 = vmatprep.subr.mxu0 0.0
        %694 = vmatpush2.msra.mxu0 0.0
        %695 = vmatprep.subr.mxu0 0.0
        %696 = vmatpush2.msra.mxu0 0.0
        %697 = vmatprep.subr.mxu0 0.0
        %698 = vmatpush2.msra.mxu0 0.0
        %699 = vmatprep.subr.mxu0 0.0
        %700 = vmatpush2.msra.mxu0 0.0
        %701 = vmatprep.subr.mxu0 0.0
        %702 = vmatpush2.msra.mxu0 0.0
        %703 = vmatprep.mubr.f32.mxu0 0.0
        %v704 = vand.u32 %v275, 4294901760
        %705 = vmatmul.mubr.f32.gmra.mxu0 %v704
        %v706 = vpop.f32.mrf.mxu0
        %v707 = vadd.f32 %v620, %v706
        %v708 = vpop.f32.mrf.mxu0
        %v709 = vadd.f32 %v622, %v708
        %710 = vmatprep.mubr.f32.mxu0 0.0
        %v711 = vand.u32 %v278, 4294901760
        %712 = vmatmul.mubr.f32.gmra.mxu0 %v711
        %v713 = vpop.f32.mrf.mxu0
        %v714 = vadd.f32 %v629, %v713
        %v715 = vpop.f32.mrf.mxu0
        %v716 = vadd.f32 %v631, %v715
        %717 = vdwg.mxu0
        %718 = vmatprep.subr.mxu0 0.0
        %719 = vmatpush1.msra.mxu0 0.0
        %720 = vmatprep.subr.mxu0 0.0
        %721 = vmatpush1.msra.mxu0 0.0
        %722 = vmatprep.subr.mxu0 0.0
        %723 = vmatpush1.msra.mxu0 0.0
        %724 = vmatprep.subr.mxu0 0.0
        %725 = vmatpush1.msra.mxu0 0.0
        %726 = vmatprep.subr.mxu0 0.0
        %727 = vmatpush1.msra.mxu0 0.0
        %728 = vmatprep.subr.mxu0 0.0
        %729 = vmatpush1.msra.mxu0 0.0
        %730 = vmatprep.subr.mxu0 0.0
        %731 = vmatpush1.msra.mxu0 0.0
        %732 = vmatprep.subr.mxu0 0.0
        %733 = vmatpush1.msra.mxu0 0.0
        %734 = vmatprep.subr.mxu0 0.0
        %735 = vmatpush1.msra.mxu0 0.0
        %736 = vmatprep.subr.mxu0 0.0
        %737 = vmatpush1.msra.mxu0 0.0
        %738 = vmatprep.subr.mxu0 0.0
        %739 = vmatpush1.msra.mxu0 0.0
        %740 = vmatprep.subr.mxu0 0.0
        %741 = vmatpush1.msra.mxu0 0.0
        %742 = vmatprep.subr.mxu0 0.0
        %743 = vmatpush1.msra.mxu0 0.0
        %744 = vmatprep.subr.mxu0 0.0
        %745 = vmatpush1.msra.mxu0 0.0
        %746 = vmatprep.subr.mxu0 0.0
        %747 = vmatpush1.msra.mxu0 0.0
        %v748 = vand.u32 %v283, 4294901760
        %749 = vmatprep.subr.mxu0 %v748
        %v750 = vand.u32 %v281, 4294901760
        %751 = vmatpush1.msra.mxu0 %v750
        %752 = vmatprep.subr.mxu0 0.0
        %753 = vmatpush2.msra.mxu0 0.0
        %754 = vmatprep.subr.mxu0 0.0
        %755 = vmatpush2.msra.mxu0 0.0
        %756 = vmatprep.subr.mxu0 0.0
        %757 = vmatpush2.msra.mxu0 0.0
        %758 = vmatprep.subr.mxu0 0.0
        %759 = vmatpush2.msra.mxu0 0.0
        %760 = vmatprep.subr.mxu0 0.0
        %761 = vmatpush2.msra.mxu0 0.0
        %762 = vmatprep.subr.mxu0 0.0
        %763 = vmatpush2.msra.mxu0 0.0
        %764 = vmatprep.subr.mxu0 0.0
        %765 = vmatpush2.msra.mxu0 0.0
        %766 = vmatprep.subr.mxu0 0.0
        %767 = vmatpush2.msra.mxu0 0.0
        %768 = vmatprep.subr.mxu0 0.0
        %769 = vmatpush2.msra.mxu0 0.0
        %770 = vmatprep.subr.mxu0 0.0
        %771 = vmatpush2.msra.mxu0 0.0
        %772 = vmatprep.subr.mxu0 0.0
        %773 = vmatpush2.msra.mxu0 0.0
        %774 = vmatprep.subr.mxu0 0.0
        %775 = vmatpush2.msra.mxu0 0.0
        %776 = vmatprep.subr.mxu0 0.0
        %777 = vmatpush2.msra.mxu0 0.0
        %778 = vmatprep.subr.mxu0 0.0
        %779 = vmatpush2.msra.mxu0 0.0
        %780 = vmatprep.subr.mxu0 0.0
        %781 = vmatpush2.msra.mxu0 0.0
        %782 = vmatprep.subr.mxu0 0.0
        %783 = vmatpush2.msra.mxu0 0.0
        %784 = vmatprep.mubr.f32.mxu0 0.0
        %v785 = vand.u32 %v275, 4294901760
        %786 = vmatmul.mubr.f32.gmra.mxu0 %v785
        %v787 = vpop.f32.mrf.mxu0
        %v788 = vadd.f32 %v707, %v787
        %v789 = vpop.f32.mrf.mxu0
        %v790 = vadd.f32 %v709, %v789
        %791 = vmatprep.mubr.f32.mxu0 0.0
        %v792 = vand.u32 %v278, 4294901760
        %793 = vmatmul.mubr.f32.gmra.mxu0 %v792
        %v794 = vpop.f32.mrf.mxu0
        %v795 = vadd.f32 %v714, %v794
        %v796 = vpop.f32.mrf.mxu0
        %v797 = vadd.f32 %v716, %v796
        %798 = vdwg.mxu0
        %v799 = vmax.f32 %v788, 0.0
        %v800 = vmax.f32 %v790, 0.0
        %v801 = vmax.f32 %v795, 0.0
        %v802 = vmax.f32 %v797, 0.0
        %804 = vset.pattern.permute.xlu0 0
        %805 = vperm.xlu0 %804, %v259
        %v806 = vpop.permute.xlu0 %805
        %vm808 = vcmask 130048
        %v810 = vsel %vm808, %v256, 0
        %812 = vmatprep.subr.mxu0 0.0
        %813 = vmatpush1.msra.mxu0 0.0
        %814 = vmatprep.subr.mxu0 0.0
        %815 = vmatpush1.msra.mxu0 0.0
        %816 = vmatprep.subr.mxu0 0.0
        %817 = vmatpush1.msra.mxu0 0.0
        %818 = vmatprep.subr.mxu0 0.0
        %819 = vmatpush1.msra.mxu0 0.0
        %820 = vmatprep.subr.mxu0 0.0
        %821 = vmatpush1.msra.mxu0 0.0
        %822 = vmatprep.subr.mxu0 0.0
        %823 = vmatpush1.msra.mxu0 0.0
        %824 = vmatprep.subr.mxu0 0.0
        %825 = vmatpush1.msra.mxu0 0.0
        %826 = vmatprep.subr.mxu0 0.0
        %827 = vmatpush1.msra.mxu0 0.0
        %828 = vmatprep.subr.mxu0 0.0
        %829 = vmatpush1.msra.mxu0 0.0
        %830 = vmatprep.subr.mxu0 0.0
        %831 = vmatpush1.msra.mxu0 0.0
        %832 = vmatprep.subr.mxu0 0.0
        %833 = vmatpush1.msra.mxu0 0.0
        %834 = vmatprep.subr.mxu0 0.0
        %835 = vmatpush1.msra.mxu0 0.0
        %836 = vmatprep.subr.mxu0 0.0
        %837 = vmatpush1.msra.mxu0 0.0
        %838 = vmatprep.subr.mxu0 0.0
        %839 = vmatpush1.msra.mxu0 0.0
        %v840 = vand.u32 %v802, 4294901760
        %841 = vmatprep.subr.mxu0 %v840
        %v842 = vand.u32 %v801, 4294901760
        %843 = vmatpush1.msra.mxu0 %v842
        %v844 = vand.u32 %v800, 4294901760
        %845 = vmatprep.subr.mxu0 %v844
        %v846 = vand.u32 %v799, 4294901760
        %847 = vmatpush1.msra.mxu0 %v846
        %848 = vmatprep.subr.mxu0 0.0
        %849 = vmatpush2.msra.mxu0 0.0
        %850 = vmatprep.subr.mxu0 0.0
        %851 = vmatpush2.msra.mxu0 0.0
        %852 = vmatprep.subr.mxu0 0.0
        %853 = vmatpush2.msra.mxu0 0.0
        %854 = vmatprep.subr.mxu0 0.0
        %855 = vmatpush2.msra.mxu0 0.0
        %856 = vmatprep.subr.mxu0 0.0
        %857 = vmatpush2.msra.mxu0 0.0
        %858 = vmatprep.subr.mxu0 0.0
        %859 = vmatpush2.msra.mxu0 0.0
        %860 = vmatprep.subr.mxu0 0.0
        %861 = vmatpush2.msra.mxu0 0.0
        %862 = vmatprep.subr.mxu0 0.0
        %863 = vmatpush2.msra.mxu0 0.0
        %864 = vmatprep.subr.mxu0 0.0
        %865 = vmatpush2.msra.mxu0 0.0
        %866 = vmatprep.subr.mxu0 0.0
        %867 = vmatpush2.msra.mxu0 0.0
        %868 = vmatprep.subr.mxu0 0.0
        %869 = vmatpush2.msra.mxu0 0.0
        %870 = vmatprep.subr.mxu0 0.0
        %871 = vmatpush2.msra.mxu0 0.0
        %872 = vmatprep.subr.mxu0 0.0
        %873 = vmatpush2.msra.mxu0 0.0
        %874 = vmatprep.subr.mxu0 0.0
        %875 = vmatpush2.msra.mxu0 0.0
        %876 = vmatprep.subr.mxu0 0.0
        %877 = vmatpush2.msra.mxu0 0.0
        %878 = vmatprep.subr.mxu0 0.0
        %879 = vmatpush2.msra.mxu0 0.0
        %880 = vmatprep.mubr.f32.mxu0 0.0
        %v881 = vand.u32 %v810, 4294901760
        %v882 = vsub.f32 %v810, %v881
        %v883 = vand.u32 %v882, 4294901760
        %v884 = vsub.f32 %v882, %v883
        %v885 = vand.u32 %v884, 4294901760
        %886 = vmatmul.mubr.f32.gmra.mxu0 %v885
        %v887 = vpop.f32.mrf.mxu0
        %v888 = vadd.f32 %v806, %v887
        %v889 = vpop.f32.mrf.mxu0
        %v890 = vadd.f32 %v806, %v889
        %891 = vdwg.mxu0
        %892 = vmatprep.subr.mxu0 0.0
        %893 = vmatpush1.msra.mxu0 0.0
        %894 = vmatprep.subr.mxu0 0.0
        %895 = vmatpush1.msra.mxu0 0.0
        %896 = vmatprep.subr.mxu0 0.0
        %897 = vmatpush1.msra.mxu0 0.0
        %898 = vmatprep.subr.mxu0 0.0
        %899 = vmatpush1.msra.mxu0 0.0
        %900 = vmatprep.subr.mxu0 0.0
        %901 = vmatpush1.msra.mxu0 0.0
        %902 = vmatprep.subr.mxu0 0.0
        %903 = vmatpush1.msra.mxu0 0.0
        %904 = vmatprep.subr.mxu0 0.0
        %905 = vmatpush1.msra.mxu0 0.0
        %906 = vmatprep.subr.mxu0 0.0
        %907 = vmatpush1.msra.mxu0 0.0
        %908 = vmatprep.subr.mxu0 0.0
        %909 = vmatpush1.msra.mxu0 0.0
        %910 = vmatprep.subr.mxu0 0.0
        %911 = vmatpush1.msra.mxu0 0.0
        %912 = vmatprep.subr.mxu0 0.0
        %913 = vmatpush1.msra.mxu0 0.0
        %914 = vmatprep.subr.mxu0 0.0
        %915 = vmatpush1.msra.mxu0 0.0
        %916 = vmatprep.subr.mxu0 0.0
        %917 = vmatpush1.msra.mxu0 0.0
        %918 = vmatprep.subr.mxu0 0.0
        %919 = vmatpush1.msra.mxu0 0.0
        %v920 = vand.u32 %v802, 4294901760
        %v921 = vsub.f32 %v802, %v920
        %v922 = vand.u32 %v921, 4294901760
        %v923 = vsub.f32 %v921, %v922
        %v924 = vand.u32 %v923, 4294901760
        %925 = vmatprep.subr.mxu0 %v924
        %v926 = vand.u32 %v801, 4294901760
        %v927 = vsub.f32 %v801, %v926
        %v928 = vand.u32 %v927, 4294901760
        %v929 = vsub.f32 %v927, %v928
        %v930 = vand.u32 %v929, 4294901760
        %931 = vmatpush1.msra.mxu0 %v930
        %v932 = vand.u32 %v800, 4294901760
        %v933 = vsub.f32 %v800, %v932
        %v934 = vand.u32 %v933, 4294901760
        %v935 = vsub.f32 %v933, %v934
        %v936 = vand.u32 %v935, 4294901760
        %937 = vmatprep.subr.mxu0 %v936
        %v938 = vand.u32 %v799, 4294901760
        %v939 = vsub.f32 %v799, %v938
        %v940 = vand.u32 %v939, 4294901760
        %v941 = vsub.f32 %v939, %v940
        %v942 = vand.u32 %v941, 4294901760
        %943 = vmatpush1.msra.mxu0 %v942
        %944 = vmatprep.subr.mxu0 0.0
        %945 = vmatpush2.msra.mxu0 0.0
        %946 = vmatprep.subr.mxu0 0.0
        %947 = vmatpush2.msra.mxu0 0.0
        %948 = vmatprep.subr.mxu0 0.0
        %949 = vmatpush2.msra.mxu0 0.0
        %950 = vmatprep.subr.mxu0 0.0
        %951 = vmatpush2.msra.mxu0 0.0
        %952 = vmatprep.subr.mxu0 0.0
        %953 = vmatpush2.msra.mxu0 0.0
        %954 = vmatprep.subr.mxu0 0.0
        %955 = vmatpush2.msra.mxu0 0.0
        %956 = vmatprep.subr.mxu0 0.0
        %957 = vmatpush2.msra.mxu0 0.0
        %958 = vmatprep.subr.mxu0 0.0
        %959 = vmatpush2.msra.mxu0 0.0
        %960 = vmatprep.subr.mxu0 0.0
        %961 = vmatpush2.msra.mxu0 0.0
        %962 = vmatprep.subr.mxu0 0.0
        %963 = vmatpush2.msra.mxu0 0.0
        %964 = vmatprep.subr.mxu0 0.0
        %965 = vmatpush2.msra.mxu0 0.0
        %966 = vmatprep.subr.mxu0 0.0
        %967 = vmatpush2.msra.mxu0 0.0
        %968 = vmatprep.subr.mxu0 0.0
        %969 = vmatpush2.msra.mxu0 0.0
        %970 = vmatprep.subr.mxu0 0.0
        %971 = vmatpush2.msra.mxu0 0.0
        %972 = vmatprep.subr.mxu0 0.0
        %973 = vmatpush2.msra.mxu0 0.0
        %974 = vmatprep.subr.mxu0 0.0
        %975 = vmatpush2.msra.mxu0 0.0
        %976 = vmatprep.mubr.f32.mxu0 0.0
        %v977 = vand.u32 %v810, 4294901760
        %978 = vmatmul.mubr.f32.gmra.mxu0 %v977
        %v979 = vpop.f32.mrf.mxu0
        %v980 = vadd.f32 %v888, %v979
        %v981 = vpop.f32.mrf.mxu0
        %v982 = vadd.f32 %v890, %v981
        %983 = vdwg.mxu0
        %984 = vmatprep.subr.mxu0 0.0
        %985 = vmatpush1.msra.mxu0 0.0
        %986 = vmatprep.subr.mxu0 0.0
        %987 = vmatpush1.msra.mxu0 0.0
        %988 = vmatprep.subr.mxu0 0.0
        %989 = vmatpush1.msra.mxu0 0.0
        %990 = vmatprep.subr.mxu0 0.0
        %991 = vmatpush1.msra.mxu0 0.0
        %992 = vmatprep.subr.mxu0 0.0
        %993 = vmatpush1.msra.mxu0 0.0
        %994 = vmatprep.subr.mxu0 0.0
        %995 = vmatpush1.msra.mxu0 0.0
        %996 = vmatprep.subr.mxu0 0.0
        %997 = vmatpush1.msra.mxu0 0.0
        %998 = vmatprep.subr.mxu0 0.0
        %999 = vmatpush1.msra.mxu0 0.0
        %1000 = vmatprep.subr.mxu0 0.0
        %1001 = vmatpush1.msra.mxu0 0.0
        %1002 = vmatprep.subr.mxu0 0.0
        %1003 = vmatpush1.msra.mxu0 0.0
        %1004 = vmatprep.subr.mxu0 0.0
        %1005 = vmatpush1.msra.mxu0 0.0
        %1006 = vmatprep.subr.mxu0 0.0
        %1007 = vmatpush1.msra.mxu0 0.0
        %1008 = vmatprep.subr.mxu0 0.0
        %1009 = vmatpush1.msra.mxu0 0.0
        %1010 = vmatprep.subr.mxu0 0.0
        %1011 = vmatpush1.msra.mxu0 0.0
        %v1012 = vand.u32 %v802, 4294901760
        %v1013 = vsub.f32 %v802, %v1012
        %1014 = vmatprep.subr.mxu0 %v1013
        %v1015 = vand.u32 %v801, 4294901760
        %v1016 = vsub.f32 %v801, %v1015
        %1017 = vmatpush1.msra.mxu0 %v1016
        %v1018 = vand.u32 %v800, 4294901760
        %v1019 = vsub.f32 %v800, %v1018
        %1020 = vmatprep.subr.mxu0 %v1019
        %v1021 = vand.u32 %v799, 4294901760
        %v1022 = vsub.f32 %v799, %v1021
        %1023 = vmatpush1.msra.mxu0 %v1022
        %1024 = vmatprep.subr.mxu0 0.0
        %1025 = vmatpush2.msra.mxu0 0.0
        %1026 = vmatprep.subr.mxu0 0.0
        %1027 = vmatpush2.msra.mxu0 0.0
        %1028 = vmatprep.subr.mxu0 0.0
        %1029 = vmatpush2.msra.mxu0 0.0
        %1030 = vmatprep.subr.mxu0 0.0
        %1031 = vmatpush2.msra.mxu0 0.0
        %1032 = vmatprep.subr.mxu0 0.0
        %1033 = vmatpush2.msra.mxu0 0.0
        %1034 = vmatprep.subr.mxu0 0.0
        %1035 = vmatpush2.msra.mxu0 0.0
        %1036 = vmatprep.subr.mxu0 0.0
        %1037 = vmatpush2.msra.mxu0 0.0
        %1038 = vmatprep.subr.mxu0 0.0
        %1039 = vmatpush2.msra.mxu0 0.0
        %1040 = vmatprep.subr.mxu0 0.0
        %1041 = vmatpush2.msra.mxu0 0.0
        %1042 = vmatprep.subr.mxu0 0.0
        %1043 = vmatpush2.msra.mxu0 0.0
        %1044 = vmatprep.subr.mxu0 0.0
        %1045 = vmatpush2.msra.mxu0 0.0
        %1046 = vmatprep.subr.mxu0 0.0
        %1047 = vmatpush2.msra.mxu0 0.0
        %1048 = vmatprep.subr.mxu0 0.0
        %1049 = vmatpush2.msra.mxu0 0.0
        %1050 = vmatprep.subr.mxu0 0.0
        %1051 = vmatpush2.msra.mxu0 0.0
        %1052 = vmatprep.subr.mxu0 0.0
        %1053 = vmatpush2.msra.mxu0 0.0
        %1054 = vmatprep.subr.mxu0 0.0
        %1055 = vmatpush2.msra.mxu0 0.0
        %1056 = vmatprep.mubr.f32.mxu0 0.0
        %v1057 = vand.u32 %v810, 4294901760
        %v1058 = vsub.f32 %v810, %v1057
        %1059 = vmatmul.mubr.f32.gmra.mxu0 %v1058
        %v1060 = vpop.f32.mrf.mxu0
        %v1061 = vadd.f32 %v980, %v1060
        %v1062 = vpop.f32.mrf.mxu0
        %v1063 = vadd.f32 %v982, %v1062
        %1064 = vdwg.mxu0
        %1065 = vmatprep.subr.mxu0 0.0
        %1066 = vmatpush1.msra.mxu0 0.0
        %1067 = vmatprep.subr.mxu0 0.0
        %1068 = vmatpush1.msra.mxu0 0.0
        %1069 = vmatprep.subr.mxu0 0.0
        %1070 = vmatpush1.msra.mxu0 0.0
        %1071 = vmatprep.subr.mxu0 0.0
        %1072 = vmatpush1.msra.mxu0 0.0
        %1073 = vmatprep.subr.mxu0 0.0
        %1074 = vmatpush1.msra.mxu0 0.0
        %1075 = vmatprep.subr.mxu0 0.0
        %1076 = vmatpush1.msra.mxu0 0.0
        %1077 = vmatprep.subr.mxu0 0.0
        %1078 = vmatpush1.msra.mxu0 0.0
        %1079 = vmatprep.subr.mxu0 0.0
        %1080 = vmatpush1.msra.mxu0 0.0
        %1081 = vmatprep.subr.mxu0 0.0
        %1082 = vmatpush1.msra.mxu0 0.0
        %1083 = vmatprep.subr.mxu0 0.0
        %1084 = vmatpush1.msra.mxu0 0.0
        %1085 = vmatprep.subr.mxu0 0.0
        %1086 = vmatpush1.msra.mxu0 0.0
        %1087 = vmatprep.subr.mxu0 0.0
        %1088 = vmatpush1.msra.mxu0 0.0
        %1089 = vmatprep.subr.mxu0 0.0
        %1090 = vmatpush1.msra.mxu0 0.0
        %1091 = vmatprep.subr.mxu0 0.0
        %1092 = vmatpush1.msra.mxu0 0.0
        %v1093 = vand.u32 %v802, 4294901760
        %1094 = vmatprep.subr.mxu0 %v1093
        %v1095 = vand.u32 %v801, 4294901760
        %1096 = vmatpush1.msra.mxu0 %v1095
        %v1097 = vand.u32 %v800, 4294901760
        %1098 = vmatprep.subr.mxu0 %v1097
        %v1099 = vand.u32 %v799, 4294901760
        %1100 = vmatpush1.msra.mxu0 %v1099
        %1101 = vmatprep.subr.mxu0 0.0
        %1102 = vmatpush2.msra.mxu0 0.0
        %1103 = vmatprep.subr.mxu0 0.0
        %1104 = vmatpush2.msra.mxu0 0.0
        %1105 = vmatprep.subr.mxu0 0.0
        %1106 = vmatpush2.msra.mxu0 0.0
        %1107 = vmatprep.subr.mxu0 0.0
        %1108 = vmatpush2.msra.mxu0 0.0
        %1109 = vmatprep.subr.mxu0 0.0
        %1110 = vmatpush2.msra.mxu0 0.0
        %1111 = vmatprep.subr.mxu0 0.0
        %1112 = vmatpush2.msra.mxu0 0.0
        %1113 = vmatprep.subr.mxu0 0.0
        %1114 = vmatpush2.msra.mxu0 0.0
        %1115 = vmatprep.subr.mxu0 0.0
        %1116 = vmatpush2.msra.mxu0 0.0
        %1117 = vmatprep.subr.mxu0 0.0
        %1118 = vmatpush2.msra.mxu0 0.0
        %1119 = vmatprep.subr.mxu0 0.0
        %1120 = vmatpush2.msra.mxu0 0.0
        %1121 = vmatprep.subr.mxu0 0.0
        %1122 = vmatpush2.msra.mxu0 0.0
        %1123 = vmatprep.subr.mxu0 0.0
        %1124 = vmatpush2.msra.mxu0 0.0
        %1125 = vmatprep.subr.mxu0 0.0
        %1126 = vmatpush2.msra.mxu0 0.0
        %1127 = vmatprep.subr.mxu0 0.0
        %1128 = vmatpush2.msra.mxu0 0.0
        %1129 = vmatprep.subr.mxu0 0.0
        %1130 = vmatpush2.msra.mxu0 0.0
        %1131 = vmatprep.subr.mxu0 0.0
        %1132 = vmatpush2.msra.mxu0 0.0
        %1133 = vmatprep.mubr.f32.mxu0 0.0
        %v1134 = vand.u32 %v810, 4294901760
        %v1135 = vsub.f32 %v810, %v1134
        %v1136 = vand.u32 %v1135, 4294901760
        %1137 = vmatmul.mubr.f32.gmra.mxu0 %v1136
        %v1138 = vpop.f32.mrf.mxu0
        %v1139 = vadd.f32 %v1061, %v1138
        %v1140 = vpop.f32.mrf.mxu0
        %v1141 = vadd.f32 %v1063, %v1140
        %1142 = vdwg.mxu0
        %1143 = vmatprep.subr.mxu0 0.0
        %1144 = vmatpush1.msra.mxu0 0.0
        %1145 = vmatprep.subr.mxu0 0.0
        %1146 = vmatpush1.msra.mxu0 0.0
        %1147 = vmatprep.subr.mxu0 0.0
        %1148 = vmatpush1.msra.mxu0 0.0
        %1149 = vmatprep.subr.mxu0 0.0
        %1150 = vmatpush1.msra.mxu0 0.0
        %1151 = vmatprep.subr.mxu0 0.0
        %1152 = vmatpush1.msra.mxu0 0.0
        %1153 = vmatprep.subr.mxu0 0.0
        %1154 = vmatpush1.msra.mxu0 0.0
        %1155 = vmatprep.subr.mxu0 0.0
        %1156 = vmatpush1.msra.mxu0 0.0
        %1157 = vmatprep.subr.mxu0 0.0
        %1158 = vmatpush1.msra.mxu0 0.0
        %1159 = vmatprep.subr.mxu0 0.0
        %1160 = vmatpush1.msra.mxu0 0.0
        %1161 = vmatprep.subr.mxu0 0.0
        %1162 = vmatpush1.msra.mxu0 0.0
        %1163 = vmatprep.subr.mxu0 0.0
        %1164 = vmatpush1.msra.mxu0 0.0
        %1165 = vmatprep.subr.mxu0 0.0
        %1166 = vmatpush1.msra.mxu0 0.0
        %1167 = vmatprep.subr.mxu0 0.0
        %1168 = vmatpush1.msra.mxu0 0.0
        %1169 = vmatprep.subr.mxu0 0.0
        %1170 = vmatpush1.msra.mxu0 0.0
        %v1171 = vand.u32 %v802, 4294901760
        %v1172 = vsub.f32 %v802, %v1171
        %v1173 = vand.u32 %v1172, 4294901760
        %1174 = vmatprep.subr.mxu0 %v1173
        %v1175 = vand.u32 %v801, 4294901760
        %v1176 = vsub.f32 %v801, %v1175
        %v1177 = vand.u32 %v1176, 4294901760
        %1178 = vmatpush1.msra.mxu0 %v1177
        %v1179 = vand.u32 %v800, 4294901760
        %v1180 = vsub.f32 %v800, %v1179
        %v1181 = vand.u32 %v1180, 4294901760
        %1182 = vmatprep.subr.mxu0 %v1181
        %v1183 = vand.u32 %v799, 4294901760
        %v1184 = vsub.f32 %v799, %v1183
        %v1185 = vand.u32 %v1184, 4294901760
        %1186 = vmatpush1.msra.mxu0 %v1185
        %1187 = vmatprep.subr.mxu0 0.0
        %1188 = vmatpush2.msra.mxu0 0.0
        %1189 = vmatprep.subr.mxu0 0.0
        %1190 = vmatpush2.msra.mxu0 0.0
        %1191 = vmatprep.subr.mxu0 0.0
        %1192 = vmatpush2.msra.mxu0 0.0
        %1193 = vmatprep.subr.mxu0 0.0
        %1194 = vmatpush2.msra.mxu0 0.0
        %1195 = vmatprep.subr.mxu0 0.0
        %1196 = vmatpush2.msra.mxu0 0.0
        %1197 = vmatprep.subr.mxu0 0.0
        %1198 = vmatpush2.msra.mxu0 0.0
        %1199 = vmatprep.subr.mxu0 0.0
        %1200 = vmatpush2.msra.mxu0 0.0
        %1201 = vmatprep.subr.mxu0 0.0
        %1202 = vmatpush2.msra.mxu0 0.0
        %1203 = vmatprep.subr.mxu0 0.0
        %1204 = vmatpush2.msra.mxu0 0.0
        %1205 = vmatprep.subr.mxu0 0.0
        %1206 = vmatpush2.msra.mxu0 0.0
        %1207 = vmatprep.subr.mxu0 0.0
        %1208 = vmatpush2.msra.mxu0 0.0
        %1209 = vmatprep.subr.mxu0 0.0
        %1210 = vmatpush2.msra.mxu0 0.0
        %1211 = vmatprep.subr.mxu0 0.0
        %1212 = vmatpush2.msra.mxu0 0.0
        %1213 = vmatprep.subr.mxu0 0.0
        %1214 = vmatpush2.msra.mxu0 0.0
        %1215 = vmatprep.subr.mxu0 0.0
        %1216 = vmatpush2.msra.mxu0 0.0
        %1217 = vmatprep.subr.mxu0 0.0
        %1218 = vmatpush2.msra.mxu0 0.0
        %1219 = vmatprep.mubr.f32.mxu0 0.0
        %v1220 = vand.u32 %v810, 4294901760
        %1221 = vmatmul.mubr.f32.gmra.mxu0 %v1220
        %v1222 = vpop.f32.mrf.mxu0
        %v1223 = vadd.f32 %v1139, %v1222
        %v1224 = vpop.f32.mrf.mxu0
        %v1225 = vadd.f32 %v1141, %v1224
        %1226 = vdwg.mxu0
        %1227 = vmatprep.subr.mxu0 0.0
        %1228 = vmatpush1.msra.mxu0 0.0
        %1229 = vmatprep.subr.mxu0 0.0
        %1230 = vmatpush1.msra.mxu0 0.0
        %1231 = vmatprep.subr.mxu0 0.0
        %1232 = vmatpush1.msra.mxu0 0.0
        %1233 = vmatprep.subr.mxu0 0.0
        %1234 = vmatpush1.msra.mxu0 0.0
        %1235 = vmatprep.subr.mxu0 0.0
        %1236 = vmatpush1.msra.mxu0 0.0
        %1237 = vmatprep.subr.mxu0 0.0
        %1238 = vmatpush1.msra.mxu0 0.0
        %1239 = vmatprep.subr.mxu0 0.0
        %1240 = vmatpush1.msra.mxu0 0.0
        %1241 = vmatprep.subr.mxu0 0.0
        %1242 = vmatpush1.msra.mxu0 0.0
        %1243 = vmatprep.subr.mxu0 0.0
        %1244 = vmatpush1.msra.mxu0 0.0
        %1245 = vmatprep.subr.mxu0 0.0
        %1246 = vmatpush1.msra.mxu0 0.0
        %1247 = vmatprep.subr.mxu0 0.0
        %1248 = vmatpush1.msra.mxu0 0.0
        %1249 = vmatprep.subr.mxu0 0.0
        %1250 = vmatpush1.msra.mxu0 0.0
        %1251 = vmatprep.subr.mxu0 0.0
        %1252 = vmatpush1.msra.mxu0 0.0
        %1253 = vmatprep.subr.mxu0 0.0
        %1254 = vmatpush1.msra.mxu0 0.0
        %v1255 = vand.u32 %v802, 4294901760
        %1256 = vmatprep.subr.mxu0 %v1255
        %v1257 = vand.u32 %v801, 4294901760
        %1258 = vmatpush1.msra.mxu0 %v1257
        %v1259 = vand.u32 %v800, 4294901760
        %1260 = vmatprep.subr.mxu0 %v1259
        %v1261 = vand.u32 %v799, 4294901760
        %1262 = vmatpush1.msra.mxu0 %v1261
        %1263 = vmatprep.subr.mxu0 0.0
        %1264 = vmatpush2.msra.mxu0 0.0
        %1265 = vmatprep.subr.mxu0 0.0
        %1266 = vmatpush2.msra.mxu0 0.0
        %1267 = vmatprep.subr.mxu0 0.0
        %1268 = vmatpush2.msra.mxu0 0.0
        %1269 = vmatprep.subr.mxu0 0.0
        %1270 = vmatpush2.msra.mxu0 0.0
        %1271 = vmatprep.subr.mxu0 0.0
        %1272 = vmatpush2.msra.mxu0 0.0
        %1273 = vmatprep.subr.mxu0 0.0
        %1274 = vmatpush2.msra.mxu0 0.0
        %1275 = vmatprep.subr.mxu0 0.0
        %1276 = vmatpush2.msra.mxu0 0.0
        %1277 = vmatprep.subr.mxu0 0.0
        %1278 = vmatpush2.msra.mxu0 0.0
        %1279 = vmatprep.subr.mxu0 0.0
        %1280 = vmatpush2.msra.mxu0 0.0
        %1281 = vmatprep.subr.mxu0 0.0
        %1282 = vmatpush2.msra.mxu0 0.0
        %1283 = vmatprep.subr.mxu0 0.0
        %1284 = vmatpush2.msra.mxu0 0.0
        %1285 = vmatprep.subr.mxu0 0.0
        %1286 = vmatpush2.msra.mxu0 0.0
        %1287 = vmatprep.subr.mxu0 0.0
        %1288 = vmatpush2.msra.mxu0 0.0
        %1289 = vmatprep.subr.mxu0 0.0
        %1290 = vmatpush2.msra.mxu0 0.0
        %1291 = vmatprep.subr.mxu0 0.0
        %1292 = vmatpush2.msra.mxu0 0.0
        %1293 = vmatprep.subr.mxu0 0.0
        %1294 = vmatpush2.msra.mxu0 0.0
        %1295 = vmatprep.mubr.f32.mxu0 0.0
        %v1296 = vand.u32 %v810, 4294901760
        %1297 = vmatmul.mubr.f32.gmra.mxu0 %v1296
        %v1298 = vpop.f32.mrf.mxu0
        %v1299 = vadd.f32 %v1223, %v1298
        %v1300 = vpop.f32.mrf.mxu0
        %v1301 = vadd.f32 %v1225, %v1300
        %1302 = vdwg.mxu0
        %v1303 = vmax.f32 %v1299, 0.0
        %v1304 = vmax.f32 %v1301, 0.0
        %v1307 = vcombine.low %v1303, %v1304
        %v1309 = vadd.f32 %v260, %v1307
        %1310 = vst [vmem:[%s242] sm:$0xff] %v1309
        %s1311 = sand.u32 %s153, 1
        %s1312 = scalar_lea.sflag [#allocation3], %s1311
        %s1313 = sand.u32 %s153, 1
        %s1314 = smul.addr %s1313, 8
        %s1315 = scalar_lea.vmem [#allocation2], %s1314
        // Predicated region
        $region41: #{tpu_custom_call.1} parent=39 // pred_check
          %p1316 = pneg %p163
        $region42: #{tpu_custom_call.1} parent=39 // pred_check_branch
          %1318 = sbr.rel (%p1316) target = $region44
        $region43: #{tpu_custom_call.1} parent=39 // pred_region
          %s1319 = smul.u32 2, %s24
          %s1321 = ssub.s32 128, 128
          %1322 = vsyncadd %s1312, %s1321
          %s1323 = smul.addr %s23, 2
          %s1324 = sadd.s32 %s1319, %s1323
          %s1325 = smul.addr %s1324, 64
          %s1326 = scalar_lea.hbm %s5, %s1325
          %s1328 = sshll.u32 %s1315, 4
          %s1329 = int_to_ptr.vmem [resolvable:$true] %s1328
          %1331 = dma.vmem_to_hbm [thread:$0]  %s1329, 128, %s1326, %s1312
        $region44: #{tpu_custom_call.1} parent=39 // pred_fallthru
          _
      $region40: #{tpu_custom_call.1} parent=5 // pred_fallthru
        _
      %p1332 = scmp.le.s32.totalorder 2, %s14
      // Predicated region
      $region45: #{tpu_custom_call.1} parent=5 // pred_check
        %p1333 = pneg %p1332
      $region46: #{tpu_custom_call.1} parent=5 // pred_check_branch
        %1335 = sbr.rel (%p1333) target = $region48
      $region47: #{tpu_custom_call.1} parent=5 // pred_region
        %s1336 = ssub.s32 %s14, 2
        // Predicated region
        $region49: #{tpu_custom_call.1} parent=47 // pred_check
          %p1337 = pneg %p169
        $region50: #{tpu_custom_call.1} parent=47 // pred_check_branch
          %1339 = sbr.rel (%p1337) target = $region52
        $region51: #{tpu_custom_call.1} parent=47 // pred_region
          %s1340 = sand.u32 %s154, 1
          %s1341 = scalar_lea.sflag [#allocation3], %s1340
          %s1342 = sand.u32 %s154, 1
          %s1343 = smul.addr %s1342, 8
          %s1344 = scalar_lea.vmem [#allocation2], %s1343
          %1345 = dma.done %s1341, 128
        $region52: #{tpu_custom_call.1} parent=47 // pred_fallthru
          _
      $region48: #{tpu_custom_call.1} parent=5 // pred_fallthru
        _
    $region6: #{tpu_custom_call.1} parent=1 // loop_footer
      %s18 = sadd.s32 1, %s14
    $region7: #{tpu_custom_call.1} parent=1 // loop_footer_branch
      %13 = sbr.rel target = $region3
    $region8: #{tpu_custom_call.1} parent=1 // loop_exit
      _
    %1346 = vsyncpa [#allocation3], 1
    %s1347 = scalar_lea.sflag [#allocation3], 1
    %1348 = vsyncpa %s1347, 1

// kernel: tpu_custom_call.1
$region0: #{tpu_custom_call.1}
  #allocation0 [shape = 'u32[]', space=smem, size = 0x4, offset = 0x4, fixed_abs, tag = 'smem constant byte address 0x4 - core index']
  #allocation1 [shape = 'u32[144,128]{1,0:T(1,128)}', space=vmem, size = 0x12000, scoped, tag = 'internal scratch']
  %s0 = inlined_call_operand.vmem [shape: f32[2,4,256], index: 0, kind: input, shape index: {}]
  %s1 = inlined_call_operand.vmem [shape: f32[16,4], index: 1, kind: input, shape index: {}]
  %s2 = inlined_call_operand.vmem [shape: f32[16,1], index: 2, kind: input, shape index: {}]
  %s3 = inlined_call_operand.vmem [shape: f32[4,16], index: 3, kind: input, shape index: {}]
  %s4 = inlined_call_operand.vmem [shape: f32[4,1], index: 4, kind: input, shape index: {}]
  %s5 = inlined_call_operand.hbm [shape: f32[2,4,256], index: 5, kind: output, shape index: {}]
  %s6 = sld [smem:[#allocation0]]
  $region53: #{tpu_custom_call.1} parent=0
    _
  %s8 = ssub.s32 1, %s6
  %s9 = scalar_select 0, %s8, %s6
  $region1: #{tpu_custom_call.1} parent=0
    #allocation2 [shape = 'u8[8192]{0}', space=vmem, size = 0x2000, scoped, tag = 'output window, operand 0']
    #allocation3 [shape = 's32[2]{0}', space=sflag, size = 0x8, scoped, tag = 'scoped memory for tpu_custom_call.1']
    %10 = vsyncpa [#allocation3], 0
    %s11 = scalar_lea.sflag [#allocation3], 1
    %12 = vsyncpa %s11, 0
    loop: start=0, step=1, limit=4
    $region2: #{tpu_custom_call.1} parent=1 // loop_pre_header
      _
    $region3: #{tpu_custom_call.1} parent=1 // loop_header
      %s14 = sphi 0, %s18
      %p15 = scmp.ge.s32.totalorder %s14, 4
      %s21 = sphi 0, %s33
      %s22 = sphi 0, %s29
      %s23 = sphi 0, %s21
      %s24 = sphi 0, %s22
      %s25 = sphi 0, %s23
      %s26 = sphi 0, %s24
      %s38 = sphi 0, %s40
      %s41 = sphi 0, %s38
      %s42 = sphi 0, %s41
      %s58 = sphi 0, %s42
      %s62 = sphi 0, %s62
      %s64 = sphi 0, %s62
      %s65 = sphi 0, %s64
      %s79 = sphi 0, %s65
      %s83 = sphi 0, %s83
      %s85 = sphi 0, %s83
      %s86 = sphi 0, %s85
      %s100 = sphi 0, %s86
      %s104 = sphi 0, %s104
      %s106 = sphi 0, %s104
      %s107 = sphi 0, %s106
      %s121 = sphi 0, %s107
      %s125 = sphi 0, %s125
      %s127 = sphi 0, %s125
      %s128 = sphi 0, %s127
      %s142 = sphi 0, %s128
      %s150 = sphi 0, %s152
      %s153 = sphi 0, %s150
      %s154 = sphi 0, %s153
      %s170 = sphi 0, %s154
    $region4: #{tpu_custom_call.1} parent=1 // loop_header_branch
      %17 = sbr.rel (%p15) target = $region8
    $region5: #{tpu_custom_call.1} parent=1 // loop_body
      %s19 = ssub.s32 %s14, 1
      %s20 = ssub.s32 %s14, 2
      %s27 = sadd.s32 1, %s22
      %p28 = scmp.ge.s32.totalorder %s27, 1
      %s29 = scalar_select %p28, 0, %s27
      %s30 = sadd.s32 1, %s21
      %s31 = scalar_select %p28, %s30, %s21
      %p32 = scmp.ge.s32.totalorder %s31, 2
      %s33 = scalar_select %p32, 0, %s31
      %s34 = ssub.s32 %s21, %s33
      %s35 = ssub.s32 %s22, %s29
      %s36 = sor.u32 %s34, %s35
      %p37 = scmp.eq.s32.totalorder %s36, 0
      %s39 = sadd.s32 %s38, 1
      %s40 = scalar_select %p37, %s38, %s39
      %p43 = pneg %p37
      %p44 = scmp.eq.s32.totalorder %s14, 1
      %p45 = por %p43, %p44
      %p46 = scmp.ne.s32.totalorder %s38, %s41
      %p47 = scmp.eq.s32.totalorder %s14, 0
      %p48 = por %p46, %p47
      %p49 = scmp.ne.s32.totalorder %s38, %s41
      %p50 = scmp.eq.s32.totalorder %s19, 1
      %p51 = por %p49, %p50
      %p52 = scmp.ne.s32.totalorder %s41, %s42
      %p53 = scmp.eq.s32.totalorder %s19, 0
      %p54 = por %p52, %p53
      %p55 = scmp.ne.s32.totalorder %s41, %s42
      %p56 = scmp.eq.s32.totalorder %s20, 1
      %p57 = por %p55, %p56
      %p59 = scmp.ne.s32.totalorder %s42, %s58
      %p60 = scmp.eq.s32.totalorder %s20, 0
      %p61 = por %p59, %p60
      %s63 = sadd.s32 %s62, 1
      %p66 = scmp.eq.s32.totalorder %s14, 1
      %p67 = scmp.ne.s32.totalorder %s62, %s64
      %p68 = scmp.eq.s32.totalorder %s14, 0
      %p69 = por %p67, %p68
      %p70 = scmp.ne.s32.totalorder %s62, %s64
      %p71 = scmp.eq.s32.totalorder %s19, 1
      %p72 = por %p70, %p71
      %p73 = scmp.ne.s32.totalorder %s64, %s65
      %p74 = scmp.eq.s32.totalorder %s19, 0
      %p75 = por %p73, %p74
      %p76 = scmp.ne.s32.totalorder %s64, %s65
      %p77 = scmp.eq.s32.totalorder %s20, 1
      %p78 = por %p76, %p77
      %p80 = scmp.ne.s32.totalorder %s65, %s79
      %p81 = scmp.eq.s32.totalorder %s20, 0
      %p82 = por %p80, %p81
      %s84 = sadd.s32 %s83, 1
      %p87 = scmp.eq.s32.totalorder %s14, 1
      %p88 = scmp.ne.s32.totalorder %s83, %s85
      %p89 = scmp.eq.s32.totalorder %s14, 0
      %p90 = por %p88, %p89
      %p91 = scmp.ne.s32.totalorder %s83, %s85
      %p92 = scmp.eq.s32.totalorder %s19, 1
      %p93 = por %p91, %p92
      %p94 = scmp.ne.s32.totalorder %s85, %s86
      %p95 = scmp.eq.s32.totalorder %s19, 0
      %p96 = por %p94, %p95
      %p97 = scmp.ne.s32.totalorder %s85, %s86
      %p98 = scmp.eq.s32.totalorder %s20, 1
      %p99 = por %p97, %p98
      %p101 = scmp.ne.s32.totalorder %s86, %s100
      %p102 = scmp.eq.s32.totalorder %s20, 0
      %p103 = por %p101, %p102
      %s105 = sadd.s32 %s104, 1
      %p108 = scmp.eq.s32.totalorder %s14, 1
      %p109 = scmp.ne.s32.totalorder %s104, %s106
      %p110 = scmp.eq.s32.totalorder %s14, 0
      %p111 = por %p109, %p110
      %p112 = scmp.ne.s32.totalorder %s104, %s106
      %p113 = scmp.eq.s32.totalorder %s19, 1
      %p114 = por %p112, %p113
      %p115 = scmp.ne.s32.totalorder %s106, %s107
      %p116 = scmp.eq.s32.totalorder %s19, 0
      %p117 = por %p115, %p116
      %p118 = scmp.ne.s32.totalorder %s106, %s107
      %p119 = scmp.eq.s32.totalorder %s20, 1
      %p120 = por %p118, %p119
      %p122 = scmp.ne.s32.totalorder %s107, %s121
      %p123 = scmp.eq.s32.totalorder %s20, 0
      %p124 = por %p122, %p123
      %s126 = sadd.s32 %s125, 1
      %p129 = scmp.eq.s32.totalorder %s14, 1
      %p130 = scmp.ne.s32.totalorder %s125, %s127
      %p131 = scmp.eq.s32.totalorder %s14, 0
      %p132 = por %p130, %p131
      %p133 = scmp.ne.s32.totalorder %s125, %s127
      %p134 = scmp.eq.s32.totalorder %s19, 1
      %p135 = por %p133, %p134
      %p136 = scmp.ne.s32.totalorder %s127, %s128
      %p137 = scmp.eq.s32.totalorder %s19, 0
      %p138 = por %p136, %p137
      %p139 = scmp.ne.s32.totalorder %s127, %s128
      %p140 = scmp.eq.s32.totalorder %s20, 1
      %p141 = por %p139, %p140
      %p143 = scmp.ne.s32.totalorder %s128, %s142
      %p144 = scmp.eq.s32.totalorder %s20, 0
      %p145 = por %p143, %p144
      %s146 = ssub.s32 %s21, %s33
      %s147 = ssub.s32 %s22, %s29
      %s148 = sor.u32 %s146, %s147
      %p149 = scmp.eq.s32.totalorder %s148, 0
      %s151 = sadd.s32 %s150, 1
      %s152 = scalar_select %p149, %s150, %s151
      %p155 = pneg %p149
      %p156 = scmp.eq.s32.totalorder %s14, 1
      %p157 = por %p155, %p156
      %p158 = scmp.ne.s32.totalorder %s150, %s153
      %p159 = scmp.eq.s32.totalorder %s14, 0
      %p160 = por %p158, %p159
      %p161 = scmp.ne.s32.totalorder %s150, %s153
      %p162 = scmp.eq.s32.totalorder %s19, 1
      %p163 = por %p161, %p162
      %p164 = scmp.ne.s32.totalorder %s153, %s154
      %p165 = scmp.eq.s32.totalorder %s19, 0
      %p166 = por %p164, %p165
      %p167 = scmp.ne.s32.totalorder %s153, %s154
      %p168 = scmp.eq.s32.totalorder %s20, 1
      %p169 = por %p167, %p168
      %p171 = scmp.ne.s32.totalorder %s154, %s170
      %p172 = scmp.eq.s32.totalorder %s20, 0
      %p173 = por %p171, %p172
      %p174 = scmp.le.s32.totalorder 1, %s14
      %p175 = scmp.lt.s32.totalorder %s14, 3
      %p176 = pnand %p174, %p175
      %p177 = pneg %p176
      // Predicated region
      $region9: #{tpu_custom_call.1} parent=5 // pred_check
        _
      $region10: #{tpu_custom_call.1} parent=5 // pred_check_branch
        %179 = sbr.rel (%p176) target = $region12
      $region11: #{tpu_custom_call.1} parent=5 // pred_region
        %s180 = ssub.s32 %s14, 1
        // Predicated region
        $region13: #{tpu_custom_call.1} parent=11 // pred_check
          %p181 = pneg %p75
        $region14: #{tpu_custom_call.1} parent=11 // pred_check_branch
          %183 = sbr.rel (%p181) target = $region16
        $region15: #{tpu_custom_call.1} parent=11 // pred_region
          _
        $region16: #{tpu_custom_call.1} parent=11 // pred_fallthru
          _
        // Predicated region
        $region17: #{tpu_custom_call.1} parent=11 // pred_check
          %p184 = pneg %p96
        $region18: #{tpu_custom_call.1} parent=11 // pred_check_branch
          %186 = sbr.rel (%p184) target = $region20
        $region19: #{tpu_custom_call.1} parent=11 // pred_region
          _
        $region20: #{tpu_custom_call.1} parent=11 // pred_fallthru
          _
        // Predicated region
        $region21: #{tpu_custom_call.1} parent=11 // pred_check
          %p187 = pneg %p117
        $region22: #{tpu_custom_call.1} parent=11 // pred_check_branch
          %189 = sbr.rel (%p187) target = $region24
        $region23: #{tpu_custom_call.1} parent=11 // pred_region
          _
        $region24: #{tpu_custom_call.1} parent=11 // pred_fallthru
          _
        // Predicated region
        $region25: #{tpu_custom_call.1} parent=11 // pred_check
          %p190 = pneg %p138
        $region26: #{tpu_custom_call.1} parent=11 // pred_check_branch
          %192 = sbr.rel (%p190) target = $region28
        $region27: #{tpu_custom_call.1} parent=11 // pred_region
          _
        $region28: #{tpu_custom_call.1} parent=11 // pred_fallthru
          _
      $region12: #{tpu_custom_call.1} parent=5 // pred_fallthru
        _
      %p193 = scmp.lt.s32.totalorder %s14, 2
      // Predicated region
      $region29: #{tpu_custom_call.1} parent=5 // pred_check
        %p194 = pneg %p193
      $region30: #{tpu_custom_call.1} parent=5 // pred_check_branch
        %196 = sbr.rel (%p194) target = $region32
      $region31: #{tpu_custom_call.1} parent=5 // pred_region
        // Predicated region
        $region33: #{tpu_custom_call.1} parent=31 // pred_check
          %p197 = pneg %p48
        $region34: #{tpu_custom_call.1} parent=31 // pred_check_branch
          %199 = sbr.rel (%p197) target = $region36
        $region35: #{tpu_custom_call.1} parent=31 // pred_region
          %s200 = smul.u32 2, %s22
          %p201 = scmp.lt.s32.totalorder %s21, 1
          %s202 = scalar_select %p201, %s21, 1
          %p203 = scmp.lt.s32.totalorder %s200, 1
          %s204 = scalar_select %p203, %s200, 1
          %s205 = smul.addr %s202, 2
          %s206 = sadd.s32 %s204, %s205
          %s207 = smul.addr %s206, 4
          %s208 = scalar_lea.vmem %s0, %s207
          %s209 = smul.u32 2, %s22
        $region36: #{tpu_custom_call.1} parent=31 // pred_fallthru
          _
      $region32: #{tpu_custom_call.1} parent=5 // pred_fallthru
        _
      %p210 = scmp.le.s32.totalorder 1, %s14
      %p211 = scmp.lt.s32.totalorder %s14, 3
      %p212 = pnand %p210, %p211
      %p213 = pneg %p212
      // Predicated region
      $region37: #{tpu_custom_call.1} parent=5 // pred_check
        _
      $region38: #{tpu_custom_call.1} parent=5 // pred_check_branch
        %215 = sbr.rel (%p212) target = $region40
      $region39: #{tpu_custom_call.1} parent=5 // pred_region
        %s216 = ssub.s32 %s14, 1
        %s217 = smul.u32 2, %s24
        %p218 = scmp.lt.s32.totalorder %s23, 1
        %s219 = scalar_select %p218, %s23, 1
        %p220 = scmp.lt.s32.totalorder %s217, 1
        %s221 = scalar_select %p220, %s217, 1
        %s222 = smul.addr %s219, 2
        %s223 = sadd.s32 %s221, %s222
        %s224 = smul.addr %s223, 4
        %s225 = scalar_lea.vmem %s0, %s224
        %p226 = pneg %p54
        %p227 = pneg %p51
        %p228 = pneg %p75
        %p229 = pneg %p72
        %p230 = pneg %p96
        %p231 = pneg %p93
        %p232 = pneg %p117
        %p233 = pneg %p114
        %p234 = pneg %p138
        %p235 = pneg %p135
        %p236 = pneg %p166
        %p237 = pneg %p163
        %s238 = sand.u32 %s153, 1
        %s239 = scalar_lea.sflag [#allocation3], %s238
        %s240 = sand.u32 %s153, 1
        %s241 = smul.addr %s240, 8
        %s242 = scalar_lea.vmem [#allocation2], %s241
        %s243 = smul.u32 2, %s24
        %p244 = scmp.lt.s32.totalorder %s23, 1
        %s245 = scalar_select %p244, %s23, 1
        %p246 = scmp.lt.s32.totalorder %s243, 1
        %s247 = scalar_select %p246, %s243, 1
        %s248 = smul.addr %s245, 2
        %s249 = sadd.s32 %s247, %s248
        %s250 = smul.addr %s249, 4
        %s251 = scalar_lea.vmem %s0, %s250
        %s252 = smul.u32 2, %s24
        %s253 = smul.u32 2, %s24
        %v254 = vld [vmem:[%s1] sm:$0xff]
        %v255 = vld [vmem:[%s1 + $0x8] sm:$0xff]
        %v256 = vld [vmem:[%s3] sm:$0xf]
        %v257 = vld [vmem:[%s2] sm:$0xff]
        %v258 = vld [vmem:[%s2 + $0x8] sm:$0xff]
        %v259 = vld [vmem:[%s4] sm:$0xf]
        %v260 = vld [vmem:[%s251] sm:$0xff]
        %262 = vset.pattern.permute.xlu0 0
        %263 = vperm.xlu0 %262, %v257
        %v264 = vpop.permute.xlu0 %263
        %267 = vset.pattern.permute.xlu0 0
        %268 = vperm.xlu0 %267, %v258
        %v269 = vpop.permute.xlu0 %268
        %v272 = vcombine.high %v260, %v260
        %vm273 = vcmask 31744
        %v275 = vsel %vm273, %v254, 0
        %v278 = vsel %vm273, %v255, 0
        %vm280 = vcmask 1043456
        %v281 = vsel %vm280, %v260, 0
        %v283 = vsel %vm280, %v272, 0
        %285 = vmatprep.subr.mxu0 0.0
        %286 = vmatpush1.msra.mxu0 0.0
        %287 = vmatprep.subr.mxu0 0.0
        %288 = vmatpush1.msra.mxu0 0.0
        %289 = vmatprep.subr.mxu0 0.0
        %290 = vmatpush1.msra.mxu0 0.0
        %291 = vmatprep.subr.mxu0 0.0
        %292 = vmatpush1.msra.mxu0 0.0
        %293 = vmatprep.subr.mxu0 0.0
        %294 = vmatpush1.msra.mxu0 0.0
        %295 = vmatprep.subr.mxu0 0.0
        %296 = vmatpush1.msra.mxu0 0.0
        %297 = vmatprep.subr.mxu0 0.0
        %298 = vmatpush1.msra.mxu0 0.0
        %299 = vmatprep.subr.mxu0 0.0
        %300 = vmatpush1.msra.mxu0 0.0
        %301 = vmatprep.subr.mxu0 0.0
        %302 = vmatpush1.msra.mxu0 0.0
        %303 = vmatprep.subr.mxu0 0.0
        %304 = vmatpush1.msra.mxu0 0.0
        %305 = vmatprep.subr.mxu0 0.0
        %306 = vmatpush1.msra.mxu0 0.0
        %307 = vmatprep.subr.mxu0 0.0
        %308 = vmatpush1.msra.mxu0 0.0
        %309 = vmatprep.subr.mxu0 0.0
        %310 = vmatpush1.msra.mxu0 0.0
        %311 = vmatprep.subr.mxu0 0.0
        %312 = vmatpush1.msra.mxu0 0.0
        %313 = vmatprep.subr.mxu0 0.0
        %314 = vmatpush1.msra.mxu0 0.0
        %v315 = vand.u32 %v283, 4294901760
        %316 = vmatprep.subr.mxu0 %v315
        %v317 = vand.u32 %v281, 4294901760
        %318 = vmatpush1.msra.mxu0 %v317
        %319 = vmatprep.subr.mxu0 0.0
        %320 = vmatpush2.msra.mxu0 0.0
        %321 = vmatprep.subr.mxu0 0.0
        %322 = vmatpush2.msra.mxu0 0.0
        %323 = vmatprep.subr.mxu0 0.0
        %324 = vmatpush2.msra.mxu0 0.0
        %325 = vmatprep.subr.mxu0 0.0
        %326 = vmatpush2.msra.mxu0 0.0
        %327 = vmatprep.subr.mxu0 0.0
        %328 = vmatpush2.msra.mxu0 0.0
        %329 = vmatprep.subr.mxu0 0.0
        %330 = vmatpush2.msra.mxu0 0.0
        %331 = vmatprep.subr.mxu0 0.0
        %332 = vmatpush2.msra.mxu0 0.0
        %333 = vmatprep.subr.mxu0 0.0
        %334 = vmatpush2.msra.mxu0 0.0
        %335 = vmatprep.subr.mxu0 0.0
        %336 = vmatpush2.msra.mxu0 0.0
        %337 = vmatprep.subr.mxu0 0.0
        %338 = vmatpush2.msra.mxu0 0.0
        %339 = vmatprep.subr.mxu0 0.0
        %340 = vmatpush2.msra.mxu0 0.0
        %341 = vmatprep.subr.mxu0 0.0
        %342 = vmatpush2.msra.mxu0 0.0
        %343 = vmatprep.subr.mxu0 0.0
        %344 = vmatpush2.msra.mxu0 0.0
        %345 = vmatprep.subr.mxu0 0.0
        %346 = vmatpush2.msra.mxu0 0.0
        %347 = vmatprep.subr.mxu0 0.0
        %348 = vmatpush2.msra.mxu0 0.0
        %349 = vmatprep.subr.mxu0 0.0
        %350 = vmatpush2.msra.mxu0 0.0
        %351 = vmatprep.mubr.f32.mxu0 0.0
        %v352 = vand.u32 %v275, 4294901760
        %v353 = vsub.f32 %v275, %v352
        %v354 = vand.u32 %v353, 4294901760
        %v355 = vsub.f32 %v353, %v354
        %v356 = vand.u32 %v355, 4294901760
        %357 = vmatmul.mubr.f32.gmra.mxu0 %v356
        %v358 = vpop.f32.mrf.mxu0
        %v359 = vadd.f32 %v264, %v358
        %v360 = vpop.f32.mrf.mxu0
        %v361 = vadd.f32 %v264, %v360
        %362 = vmatprep.mubr.f32.mxu0 0.0
        %v363 = vand.u32 %v278, 4294901760
        %v364 = vsub.f32 %v278, %v363
        %v365 = vand.u32 %v364, 4294901760
        %v366 = vsub.f32 %v364, %v365
        %v367 = vand.u32 %v366, 4294901760
        %368 = vmatmul.mubr.f32.gmra.mxu0 %v367
        %v369 = vpop.f32.mrf.mxu0
        %v370 = vadd.f32 %v269, %v369
        %v371 = vpop.f32.mrf.mxu0
        %v372 = vadd.f32 %v269, %v371
        %373 = vdwg.mxu0
        %374 = vmatprep.subr.mxu0 0.0
        %375 = vmatpush1.msra.mxu0 0.0
        %376 = vmatprep.subr.mxu0 0.0
        %377 = vmatpush1.msra.mxu0 0.0
        %378 = vmatprep.subr.mxu0 0.0
        %379 = vmatpush1.msra.mxu0 0.0
        %380 = vmatprep.subr.mxu0 0.0
        %381 = vmatpush1.msra.mxu0 0.0
        %382 = vmatprep.subr.mxu0 0.0
        %383 = vmatpush1.msra.mxu0 0.0
        %384 = vmatprep.subr.mxu0 0.0
        %385 = vmatpush1.msra.mxu0 0.0
        %386 = vmatprep.subr.mxu0 0.0
        %387 = vmatpush1.msra.mxu0 0.0
        %388 = vmatprep.subr.mxu0 0.0
        %389 = vmatpush1.msra.mxu0 0.0
        %390 = vmatprep.subr.mxu0 0.0
        %391 = vmatpush1.msra.mxu0 0.0
        %392 = vmatprep.subr.mxu0 0.0
        %393 = vmatpush1.msra.mxu0 0.0
        %394 = vmatprep.subr.mxu0 0.0
        %395 = vmatpush1.msra.mxu0 0.0
        %396 = vmatprep.subr.mxu0 0.0
        %397 = vmatpush1.msra.mxu0 0.0
        %398 = vmatprep.subr.mxu0 0.0
        %399 = vmatpush1.msra.mxu0 0.0
        %400 = vmatprep.subr.mxu0 0.0
        %401 = vmatpush1.msra.mxu0 0.0
        %402 = vmatprep.subr.mxu0 0.0
        %403 = vmatpush1.msra.mxu0 0.0
        %v404 = vand.u32 %v283, 4294901760
        %v405 = vsub.f32 %v283, %v404
        %v406 = vand.u32 %v405, 4294901760
        %v407 = vsub.f32 %v405, %v406
        %v408 = vand.u32 %v407, 4294901760
        %409 = vmatprep.subr.mxu0 %v408
        %v410 = vand.u32 %v281, 4294901760
        %v411 = vsub.f32 %v281, %v410
        %v412 = vand.u32 %v411, 4294901760
        %v413 = vsub.f32 %v411, %v412
        %v414 = vand.u32 %v413, 4294901760
        %415 = vmatpush1.msra.mxu0 %v414
        %416 = vmatprep.subr.mxu0 0.0
        %417 = vmatpush2.msra.mxu0 0.0
        %418 = vmatprep.subr.mxu0 0.0
        %419 = vmatpush2.msra.mxu0 0.0
        %420 = vmatprep.subr.mxu0 0.0
        %421 = vmatpush2.msra.mxu0 0.0
        %422 = vmatprep.subr.mxu0 0.0
        %423 = vmatpush2.msra.mxu0 0.0
        %424 = vmatprep.subr.mxu0 0.0
        %425 = vmatpush2.msra.mxu0 0.0
        %426 = vmatprep.subr.mxu0 0.0
        %427 = vmatpush2.msra.mxu0 0.0
        %428 = vmatprep.subr.mxu0 0.0
        %429 = vmatpush2.msra.mxu0 0.0
        %430 = vmatprep.subr.mxu0 0.0
        %431 = vmatpush2.msra.mxu0 0.0
        %432 = vmatprep.subr.mxu0 0.0
        %433 = vmatpush2.msra.mxu0 0.0
        %434 = vmatprep.subr.mxu0 0.0
        %435 = vmatpush2.msra.mxu0 0.0
        %436 = vmatprep.subr.mxu0 0.0
        %437 = vmatpush2.msra.mxu0 0.0
        %438 = vmatprep.subr.mxu0 0.0
        %439 = vmatpush2.msra.mxu0 0.0
        %440 = vmatprep.subr.mxu0 0.0
        %441 = vmatpush2.msra.mxu0 0.0
        %442 = vmatprep.subr.mxu0 0.0
        %443 = vmatpush2.msra.mxu0 0.0
        %444 = vmatprep.subr.mxu0 0.0
        %445 = vmatpush2.msra.mxu0 0.0
        %446 = vmatprep.subr.mxu0 0.0
        %447 = vmatpush2.msra.mxu0 0.0
        %448 = vmatprep.mubr.f32.mxu0 0.0
        %v449 = vand.u32 %v275, 4294901760
        %450 = vmatmul.mubr.f32.gmra.mxu0 %v449
        %v451 = vpop.f32.mrf.mxu0
        %v452 = vadd.f32 %v359, %v451
        %v453 = vpop.f32.mrf.mxu0
        %v454 = vadd.f32 %v361, %v453
        %455 = vmatprep.mubr.f32.mxu0 0.0
        %v456 = vand.u32 %v278, 4294901760
        %457 = vmatmul.mubr.f32.gmra.mxu0 %v456
        %v458 = vpop.f32.mrf.mxu0
        %v459 = vadd.f32 %v370, %v458
        %v460 = vpop.f32.mrf.mxu0
        %v461 = vadd.f32 %v372, %v460
        %462 = vdwg.mxu0
        %463 = vmatprep.subr.mxu0 0.0
        %464 = vmatpush1.msra.mxu0 0.0
        %465 = vmatprep.subr.mxu0 0.0
        %466 = vmatpush1.msra.mxu0 0.0
        %467 = vmatprep.subr.mxu0 0.0
        %468 = vmatpush1.msra.mxu0 0.0
        %469 = vmatprep.subr.mxu0 0.0
        %470 = vmatpush1.msra.mxu0 0.0
        %471 = vmatprep.subr.mxu0 0.0
        %472 = vmatpush1.msra.mxu0 0.0
        %473 = vmatprep.subr.mxu0 0.0
        %474 = vmatpush1.msra.mxu0 0.0
        %475 = vmatprep.subr.mxu0 0.0
        %476 = vmatpush1.msra.mxu0 0.0
        %477 = vmatprep.subr.mxu0 0.0
        %478 = vmatpush1.msra.mxu0 0.0
        %479 = vmatprep.subr.mxu0 0.0
        %480 = vmatpush1.msra.mxu0 0.0
        %481 = vmatprep.subr.mxu0 0.0
        %482 = vmatpush1.msra.mxu0 0.0
        %483 = vmatprep.subr.mxu0 0.0
        %484 = vmatpush1.msra.mxu0 0.0
        %485 = vmatprep.subr.mxu0 0.0
        %486 = vmatpush1.msra.mxu0 0.0
        %487 = vmatprep.subr.mxu0 0.0
        %488 = vmatpush1.msra.mxu0 0.0
        %489 = vmatprep.subr.mxu0 0.0
        %490 = vmatpush1.msra.mxu0 0.0
        %491 = vmatprep.subr.mxu0 0.0
        %492 = vmatpush1.msra.mxu0 0.0
        %v493 = vand.u32 %v283, 4294901760
        %v494 = vsub.f32 %v283, %v493
        %495 = vmatprep.subr.mxu0 %v494
        %v496 = vand.u32 %v281, 4294901760
        %v497 = vsub.f32 %v281, %v496
        %498 = vmatpush1.msra.mxu0 %v497
        %499 = vmatprep.subr.mxu0 0.0
        %500 = vmatpush2.msra.mxu0 0.0
        %501 = vmatprep.subr.mxu0 0.0
        %502 = vmatpush2.msra.mxu0 0.0
        %503 = vmatprep.subr.mxu0 0.0
        %504 = vmatpush2.msra.mxu0 0.0
        %505 = vmatprep.subr.mxu0 0.0
        %506 = vmatpush2.msra.mxu0 0.0
        %507 = vmatprep.subr.mxu0 0.0
        %508 = vmatpush2.msra.mxu0 0.0
        %509 = vmatprep.subr.mxu0 0.0
        %510 = vmatpush2.msra.mxu0 0.0
        %511 = vmatprep.subr.mxu0 0.0
        %512 = vmatpush2.msra.mxu0 0.0
        %513 = vmatprep.subr.mxu0 0.0
        %514 = vmatpush2.msra.mxu0 0.0
        %515 = vmatprep.subr.mxu0 0.0
        %516 = vmatpush2.msra.mxu0 0.0
        %517 = vmatprep.subr.mxu0 0.0
        %518 = vmatpush2.msra.mxu0 0.0
        %519 = vmatprep.subr.mxu0 0.0
        %520 = vmatpush2.msra.mxu0 0.0
        %521 = vmatprep.subr.mxu0 0.0
        %522 = vmatpush2.msra.mxu0 0.0
        %523 = vmatprep.subr.mxu0 0.0
        %524 = vmatpush2.msra.mxu0 0.0
        %525 = vmatprep.subr.mxu0 0.0
        %526 = vmatpush2.msra.mxu0 0.0
        %527 = vmatprep.subr.mxu0 0.0
        %528 = vmatpush2.msra.mxu0 0.0
        %529 = vmatprep.subr.mxu0 0.0
        %530 = vmatpush2.msra.mxu0 0.0
        %531 = vmatprep.mubr.f32.mxu0 0.0
        %v532 = vand.u32 %v275, 4294901760
        %v533 = vsub.f32 %v275, %v532
        %534 = vmatmul.mubr.f32.gmra.mxu0 %v533
        %v535 = vpop.f32.mrf.mxu0
        %v536 = vadd.f32 %v452, %v535
        %v537 = vpop.f32.mrf.mxu0
        %v538 = vadd.f32 %v454, %v537
        %539 = vmatprep.mubr.f32.mxu0 0.0
        %v540 = vand.u32 %v278, 4294901760
        %v541 = vsub.f32 %v278, %v540
        %542 = vmatmul.mubr.f32.gmra.mxu0 %v541
        %v543 = vpop.f32.mrf.mxu0
        %v544 = vadd.f32 %v459, %v543
        %v545 = vpop.f32.mrf.mxu0
        %v546 = vadd.f32 %v461, %v545
        %547 = vdwg.mxu0
        %548 = vmatprep.subr.mxu0 0.0
        %549 = vmatpush1.msra.mxu0 0.0
        %550 = vmatprep.subr.mxu0 0.0
        %551 = vmatpush1.msra.mxu0 0.0
        %552 = vmatprep.subr.mxu0 0.0
        %553 = vmatpush1.msra.mxu0 0.0
        %554 = vmatprep.subr.mxu0 0.0
        %555 = vmatpush1.msra.mxu0 0.0
        %556 = vmatprep.subr.mxu0 0.0
        %557 = vmatpush1.msra.mxu0 0.0
        %558 = vmatprep.subr.mxu0 0.0
        %559 = vmatpush1.msra.mxu0 0.0
        %560 = vmatprep.subr.mxu0 0.0
        %561 = vmatpush1.msra.mxu0 0.0
        %562 = vmatprep.subr.mxu0 0.0
        %563 = vmatpush1.msra.mxu0 0.0
        %564 = vmatprep.subr.mxu0 0.0
        %565 = vmatpush1.msra.mxu0 0.0
        %566 = vmatprep.subr.mxu0 0.0
        %567 = vmatpush1.msra.mxu0 0.0
        %568 = vmatprep.subr.mxu0 0.0
        %569 = vmatpush1.msra.mxu0 0.0
        %570 = vmatprep.subr.mxu0 0.0
        %571 = vmatpush1.msra.mxu0 0.0
        %572 = vmatprep.subr.mxu0 0.0
        %573 = vmatpush1.msra.mxu0 0.0
        %574 = vmatprep.subr.mxu0 0.0
        %575 = vmatpush1.msra.mxu0 0.0
        %576 = vmatprep.subr.mxu0 0.0
        %577 = vmatpush1.msra.mxu0 0.0
        %v578 = vand.u32 %v283, 4294901760
        %579 = vmatprep.subr.mxu0 %v578
        %v580 = vand.u32 %v281, 4294901760
        %581 = vmatpush1.msra.mxu0 %v580
        %582 = vmatprep.subr.mxu0 0.0
        %583 = vmatpush2.msra.mxu0 0.0
        %584 = vmatprep.subr.mxu0 0.0
        %585 = vmatpush2.msra.mxu0 0.0
        %586 = vmatprep.subr.mxu0 0.0
        %587 = vmatpush2.msra.mxu0 0.0
        %588 = vmatprep.subr.mxu0 0.0
        %589 = vmatpush2.msra.mxu0 0.0
        %590 = vmatprep.subr.mxu0 0.0
        %591 = vmatpush2.msra.mxu0 0.0
        %592 = vmatprep.subr.mxu0 0.0
        %593 = vmatpush2.msra.mxu0 0.0
        %594 = vmatprep.subr.mxu0 0.0
        %595 = vmatpush2.msra.mxu0 0.0
        %596 = vmatprep.subr.mxu0 0.0
        %597 = vmatpush2.msra.mxu0 0.0
        %598 = vmatprep.subr.mxu0 0.0
        %599 = vmatpush2.msra.mxu0 0.0
        %600 = vmatprep.subr.mxu0 0.0
        %601 = vmatpush2.msra.mxu0 0.0
        %602 = vmatprep.subr.mxu0 0.0
        %603 = vmatpush2.msra.mxu0 0.0
        %604 = vmatprep.subr.mxu0 0.0
        %605 = vmatpush2.msra.mxu0 0.0
        %606 = vmatprep.subr.mxu0 0.0
        %607 = vmatpush2.msra.mxu0 0.0
        %608 = vmatprep.subr.mxu0 0.0
        %609 = vmatpush2.msra.mxu0 0.0
        %610 = vmatprep.subr.mxu0 0.0
        %611 = vmatpush2.msra.mxu0 0.0
        %612 = vmatprep.subr.mxu0 0.0
        %613 = vmatpush2.msra.mxu0 0.0
        %614 = vmatprep.mubr.f32.mxu0 0.0
        %v615 = vand.u32 %v275, 4294901760
        %v616 = vsub.f32 %v275, %v615
        %v617 = vand.u32 %v616, 4294901760
        %618 = vmatmul.mubr.f32.gmra.mxu0 %v617
        %v619 = vpop.f32.mrf.mxu0
        %v620 = vadd.f32 %v536, %v619
        %v621 = vpop.f32.mrf.mxu0
        %v622 = vadd.f32 %v538, %v621
        %623 = vmatprep.mubr.f32.mxu0 0.0
        %v624 = vand.u32 %v278, 4294901760
        %v625 = vsub.f32 %v278, %v624
        %v626 = vand.u32 %v625, 4294901760
        %627 = vmatmul.mubr.f32.gmra.mxu0 %v626
        %v628 = vpop.f32.mrf.mxu0
        %v629 = vadd.f32 %v544, %v628
        %v630 = vpop.f32.mrf.mxu0
        %v631 = vadd.f32 %v546, %v630
        %632 = vdwg.mxu0
        %633 = vmatprep.subr.mxu0 0.0
        %634 = vmatpush1.msra.mxu0 0.0
        %635 = vmatprep.subr.mxu0 0.0
        %636 = vmatpush1.msra.mxu0 0.0
        %637 = vmatprep.subr.mxu0 0.0
        %638 = vmatpush1.msra.mxu0 0.0
        %639 = vmatprep.subr.mxu0 0.0
        %640 = vmatpush1.msra.mxu0 0.0
        %641 = vmatprep.subr.mxu0 0.0
        %642 = vmatpush1.msra.mxu0 0.0
        %643 = vmatprep.subr.mxu0 0.0
        %644 = vmatpush1.msra.mxu0 0.0
        %645 = vmatprep.subr.mxu0 0.0
        %646 = vmatpush1.msra.mxu0 0.0
        %647 = vmatprep.subr.mxu0 0.0
        %648 = vmatpush1.msra.mxu0 0.0
        %649 = vmatprep.subr.mxu0 0.0
        %650 = vmatpush1.msra.mxu0 0.0
        %651 = vmatprep.subr.mxu0 0.0
        %652 = vmatpush1.msra.mxu0 0.0
        %653 = vmatprep.subr.mxu0 0.0
        %654 = vmatpush1.msra.mxu0 0.0
        %655 = vmatprep.subr.mxu0 0.0
        %656 = vmatpush1.msra.mxu0 0.0
        %657 = vmatprep.subr.mxu0 0.0
        %658 = vmatpush1.msra.mxu0 0.0
        %659 = vmatprep.subr.mxu0 0.0
        %660 = vmatpush1.msra.mxu0 0.0
        %661 = vmatprep.subr.mxu0 0.0
        %662 = vmatpush1.msra.mxu0 0.0
        %v663 = vand.u32 %v283, 4294901760
        %v664 = vsub.f32 %v283, %v663
        %v665 = vand.u32 %v664, 4294901760
        %666 = vmatprep.subr.mxu0 %v665
        %v667 = vand.u32 %v281, 4294901760
        %v668 = vsub.f32 %v281, %v667
        %v669 = vand.u32 %v668, 4294901760
        %670 = vmatpush1.msra.mxu0 %v669
        %671 = vmatprep.subr.mxu0 0.0
        %672 = vmatpush2.msra.mxu0 0.0
        %673 = vmatprep.subr.mxu0 0.0
        %674 = vmatpush2.msra.mxu0 0.0
        %675 = vmatprep.subr.mxu0 0.0
        %676 = vmatpush2.msra.mxu0 0.0
        %677 = vmatprep.subr.mxu0 0.0
        %678 = vmatpush2.msra.mxu0 0.0
        %679 = vmatprep.subr.mxu0 0.0
        %680 = vmatpush2.msra.mxu0 0.0
        %681 = vmatprep.subr.mxu0 0.0
        %682 = vmatpush2.msra.mxu0 0.0
        %683 = vmatprep.subr.mxu0 0.0
        %684 = vmatpush2.msra.mxu0 0.0
        %685 = vmatprep.subr.mxu0 0.0
        %686 = vmatpush2.msra.mxu0 0.0
        %687 = vmatprep.subr.mxu0 0.0
        %688 = vmatpush2.msra.mxu0 0.0
        %689 = vmatprep.subr.mxu0 0.0
        %690 = vmatpush2.msra.mxu0 0.0
        %691 = vmatprep.subr.mxu0 0.0
        %692 = vmatpush2.msra.mxu0 0.0
        %693 = vmatprep.subr.mxu0 0.0
        %694 = vmatpush2.msra.mxu0 0.0
        %695 = vmatprep.subr.mxu0 0.0
        %696 = vmatpush2.msra.mxu0 0.0
        %697 = vmatprep.subr.mxu0 0.0
        %698 = vmatpush2.msra.mxu0 0.0
        %699 = vmatprep.subr.mxu0 0.0
        %700 = vmatpush2.msra.mxu0 0.0
        %701 = vmatprep.subr.mxu0 0.0
        %702 = vmatpush2.msra.mxu0 0.0
        %703 = vmatprep.mubr.f32.mxu0 0.0
        %v704 = vand.u32 %v275, 4294901760
        %705 = vmatmul.mubr.f32.gmra.mxu0 %v704
        %v706 = vpop.f32.mrf.mxu0
        %v707 = vadd.f32 %v620, %v706
        %v708 = vpop.f32.mrf.mxu0
        %v709 = vadd.f32 %v622, %v708
        %710 = vmatprep.mubr.f32.mxu0 0.0
        %v711 = vand.u32 %v278, 4294901760
        %712 = vmatmul.mubr.f32.gmra.mxu0 %v711
        %v713 = vpop.f32.mrf.mxu0
        %v714 = vadd.f32 %v629, %v713
        %v715 = vpop.f32.mrf.mxu0
        %v716 = vadd.f32 %v631, %v715
        %717 = vdwg.mxu0
        %718 = vmatprep.subr.mxu0 0.0
        %719 = vmatpush1.msra.mxu0 0.0
        %720 = vmatprep.subr.mxu0 0.0
        %721 = vmatpush1.msra.mxu0 0.0
        %722 = vmatprep.subr.mxu0 0.0
        %723 = vmatpush1.msra.mxu0 0.0
        %724 = vmatprep.subr.mxu0 0.0
        %725 = vmatpush1.msra.mxu0 0.0
        %726 = vmatprep.subr.mxu0 0.0
        %727 = vmatpush1.msra.mxu0 0.0
        %728 = vmatprep.subr.mxu0 0.0
        %729 = vmatpush1.msra.mxu0 0.0
        %730 = vmatprep.subr.mxu0 0.0
        %731 = vmatpush1.msra.mxu0 0.0
        %732 = vmatprep.subr.mxu0 0.0
        %733 = vmatpush1.msra.mxu0 0.0
        %734 = vmatprep.subr.mxu0 0.0
        %735 = vmatpush1.msra.mxu0 0.0
        %736 = vmatprep.subr.mxu0 0.0
        %737 = vmatpush1.msra.mxu0 0.0
        %738 = vmatprep.subr.mxu0 0.0
        %739 = vmatpush1.msra.mxu0 0.0
        %740 = vmatprep.subr.mxu0 0.0
        %741 = vmatpush1.msra.mxu0 0.0
        %742 = vmatprep.subr.mxu0 0.0
        %743 = vmatpush1.msra.mxu0 0.0
        %744 = vmatprep.subr.mxu0 0.0
        %745 = vmatpush1.msra.mxu0 0.0
        %746 = vmatprep.subr.mxu0 0.0
        %747 = vmatpush1.msra.mxu0 0.0
        %v748 = vand.u32 %v283, 4294901760
        %749 = vmatprep.subr.mxu0 %v748
        %v750 = vand.u32 %v281, 4294901760
        %751 = vmatpush1.msra.mxu0 %v750
        %752 = vmatprep.subr.mxu0 0.0
        %753 = vmatpush2.msra.mxu0 0.0
        %754 = vmatprep.subr.mxu0 0.0
        %755 = vmatpush2.msra.mxu0 0.0
        %756 = vmatprep.subr.mxu0 0.0
        %757 = vmatpush2.msra.mxu0 0.0
        %758 = vmatprep.subr.mxu0 0.0
        %759 = vmatpush2.msra.mxu0 0.0
        %760 = vmatprep.subr.mxu0 0.0
        %761 = vmatpush2.msra.mxu0 0.0
        %762 = vmatprep.subr.mxu0 0.0
        %763 = vmatpush2.msra.mxu0 0.0
        %764 = vmatprep.subr.mxu0 0.0
        %765 = vmatpush2.msra.mxu0 0.0
        %766 = vmatprep.subr.mxu0 0.0
        %767 = vmatpush2.msra.mxu0 0.0
        %768 = vmatprep.subr.mxu0 0.0
        %769 = vmatpush2.msra.mxu0 0.0
        %770 = vmatprep.subr.mxu0 0.0
        %771 = vmatpush2.msra.mxu0 0.0
        %772 = vmatprep.subr.mxu0 0.0
        %773 = vmatpush2.msra.mxu0 0.0
        %774 = vmatprep.subr.mxu0 0.0
        %775 = vmatpush2.msra.mxu0 0.0
        %776 = vmatprep.subr.mxu0 0.0
        %777 = vmatpush2.msra.mxu0 0.0
        %778 = vmatprep.subr.mxu0 0.0
        %779 = vmatpush2.msra.mxu0 0.0
        %780 = vmatprep.subr.mxu0 0.0
        %781 = vmatpush2.msra.mxu0 0.0
        %782 = vmatprep.subr.mxu0 0.0
        %783 = vmatpush2.msra.mxu0 0.0
        %784 = vmatprep.mubr.f32.mxu0 0.0
        %v785 = vand.u32 %v275, 4294901760
        %786 = vmatmul.mubr.f32.gmra.mxu0 %v785
        %v787 = vpop.f32.mrf.mxu0
        %v788 = vadd.f32 %v707, %v787
        %v789 = vpop.f32.mrf.mxu0
        %v790 = vadd.f32 %v709, %v789
        %791 = vmatprep.mubr.f32.mxu0 0.0
        %v792 = vand.u32 %v278, 4294901760
        %793 = vmatmul.mubr.f32.gmra.mxu0 %v792
        %v794 = vpop.f32.mrf.mxu0
        %v795 = vadd.f32 %v714, %v794
        %v796 = vpop.f32.mrf.mxu0
        %v797 = vadd.f32 %v716, %v796
        %798 = vdwg.mxu0
        %v799 = vmax.f32 %v788, 0.0
        %v800 = vmax.f32 %v790, 0.0
        %v801 = vmax.f32 %v795, 0.0
        %v802 = vmax.f32 %v797, 0.0
        %804 = vset.pattern.permute.xlu0 0
        %805 = vperm.xlu0 %804, %v259
        %v806 = vpop.permute.xlu0 %805
        %vm808 = vcmask 130048
        %v810 = vsel %vm808, %v256, 0
        %812 = vmatprep.subr.mxu0 0.0
        %813 = vmatpush1.msra.mxu0 0.0
        %814 = vmatprep.subr.mxu0 0.0
        %815 = vmatpush1.msra.mxu0 0.0
        %816 = vmatprep.subr.mxu0 0.0
        %817 = vmatpush1.msra.mxu0 0.0
        %818 = vmatprep.subr.mxu0 0.0
        %819 = vmatpush1.msra.mxu0 0.0
        %820 = vmatprep.subr.mxu0 0.0
        %821 = vmatpush1.msra.mxu0 0.0
        %822 = vmatprep.subr.mxu0 0.0
        %823 = vmatpush1.msra.mxu0 0.0
        %824 = vmatprep.subr.mxu0 0.0
        %825 = vmatpush1.msra.mxu0 0.0
        %826 = vmatprep.subr.mxu0 0.0
        %827 = vmatpush1.msra.mxu0 0.0
        %828 = vmatprep.subr.mxu0 0.0
        %829 = vmatpush1.msra.mxu0 0.0
        %830 = vmatprep.subr.mxu0 0.0
        %831 = vmatpush1.msra.mxu0 0.0
        %832 = vmatprep.subr.mxu0 0.0
        %833 = vmatpush1.msra.mxu0 0.0
        %834 = vmatprep.subr.mxu0 0.0
        %835 = vmatpush1.msra.mxu0 0.0
        %836 = vmatprep.subr.mxu0 0.0
        %837 = vmatpush1.msra.mxu0 0.0
        %838 = vmatprep.subr.mxu0 0.0
        %839 = vmatpush1.msra.mxu0 0.0
        %v840 = vand.u32 %v802, 4294901760
        %841 = vmatprep.subr.mxu0 %v840
        %v842 = vand.u32 %v801, 4294901760
        %843 = vmatpush1.msra.mxu0 %v842
        %v844 = vand.u32 %v800, 4294901760
        %845 = vmatprep.subr.mxu0 %v844
        %v846 = vand.u32 %v799, 4294901760
        %847 = vmatpush1.msra.mxu0 %v846
        %848 = vmatprep.subr.mxu0 0.0
        %849 = vmatpush2.msra.mxu0 0.0
        %850 = vmatprep.subr.mxu0 0.0
        %851 = vmatpush2.msra.mxu0 0.0
        %852 = vmatprep.subr.mxu0 0.0
        %853 = vmatpush2.msra.mxu0 0.0
        %854 = vmatprep.subr.mxu0 0.0
        %855 = vmatpush2.msra.mxu0 0.0
        %856 = vmatprep.subr.mxu0 0.0
        %857 = vmatpush2.msra.mxu0 0.0
        %858 = vmatprep.subr.mxu0 0.0
        %859 = vmatpush2.msra.mxu0 0.0
        %860 = vmatprep.subr.mxu0 0.0
        %861 = vmatpush2.msra.mxu0 0.0
        %862 = vmatprep.subr.mxu0 0.0
        %863 = vmatpush2.msra.mxu0 0.0
        %864 = vmatprep.subr.mxu0 0.0
        %865 = vmatpush2.msra.mxu0 0.0
        %866 = vmatprep.subr.mxu0 0.0
        %867 = vmatpush2.msra.mxu0 0.0
        %868 = vmatprep.subr.mxu0 0.0
        %869 = vmatpush2.msra.mxu0 0.0
        %870 = vmatprep.subr.mxu0 0.0
        %871 = vmatpush2.msra.mxu0 0.0
        %872 = vmatprep.subr.mxu0 0.0
        %873 = vmatpush2.msra.mxu0 0.0
        %874 = vmatprep.subr.mxu0 0.0
        %875 = vmatpush2.msra.mxu0 0.0
        %876 = vmatprep.subr.mxu0 0.0
        %877 = vmatpush2.msra.mxu0 0.0
        %878 = vmatprep.subr.mxu0 0.0
        %879 = vmatpush2.msra.mxu0 0.0
        %880 = vmatprep.mubr.f32.mxu0 0.0
        %v881 = vand.u32 %v810, 4294901760
        %v882 = vsub.f32 %v810, %v881
        %v883 = vand.u32 %v882, 4294901760
        %v884 = vsub.f32 %v882, %v883
        %v885 = vand.u32 %v884, 4294901760
        %886 = vmatmul.mubr.f32.gmra.mxu0 %v885
        %v887 = vpop.f32.mrf.mxu0
        %v888 = vadd.f32 %v806, %v887
        %v889 = vpop.f32.mrf.mxu0
        %v890 = vadd.f32 %v806, %v889
        %891 = vdwg.mxu0
        %892 = vmatprep.subr.mxu0 0.0
        %893 = vmatpush1.msra.mxu0 0.0
        %894 = vmatprep.subr.mxu0 0.0
        %895 = vmatpush1.msra.mxu0 0.0
        %896 = vmatprep.subr.mxu0 0.0
        %897 = vmatpush1.msra.mxu0 0.0
        %898 = vmatprep.subr.mxu0 0.0
        %899 = vmatpush1.msra.mxu0 0.0
        %900 = vmatprep.subr.mxu0 0.0
        %901 = vmatpush1.msra.mxu0 0.0
        %902 = vmatprep.subr.mxu0 0.0
        %903 = vmatpush1.msra.mxu0 0.0
        %904 = vmatprep.subr.mxu0 0.0
        %905 = vmatpush1.msra.mxu0 0.0
        %906 = vmatprep.subr.mxu0 0.0
        %907 = vmatpush1.msra.mxu0 0.0
        %908 = vmatprep.subr.mxu0 0.0
        %909 = vmatpush1.msra.mxu0 0.0
        %910 = vmatprep.subr.mxu0 0.0
        %911 = vmatpush1.msra.mxu0 0.0
        %912 = vmatprep.subr.mxu0 0.0
        %913 = vmatpush1.msra.mxu0 0.0
        %914 = vmatprep.subr.mxu0 0.0
        %915 = vmatpush1.msra.mxu0 0.0
        %916 = vmatprep.subr.mxu0 0.0
        %917 = vmatpush1.msra.mxu0 0.0
        %918 = vmatprep.subr.mxu0 0.0
        %919 = vmatpush1.msra.mxu0 0.0
        %v920 = vand.u32 %v802, 4294901760
        %v921 = vsub.f32 %v802, %v920
        %v922 = vand.u32 %v921, 4294901760
        %v923 = vsub.f32 %v921, %v922
        %v924 = vand.u32 %v923, 4294901760
        %925 = vmatprep.subr.mxu0 %v924
        %v926 = vand.u32 %v801, 4294901760
        %v927 = vsub.f32 %v801, %v926
        %v928 = vand.u32 %v927, 4294901760
        %v929 = vsub.f32 %v927, %v928
        %v930 = vand.u32 %v929, 4294901760
        %931 = vmatpush1.msra.mxu0 %v930
        %v932 = vand.u32 %v800, 4294901760
        %v933 = vsub.f32 %v800, %v932
        %v934 = vand.u32 %v933, 4294901760
        %v935 = vsub.f32 %v933, %v934
        %v936 = vand.u32 %v935, 4294901760
        %937 = vmatprep.subr.mxu0 %v936
        %v938 = vand.u32 %v799, 4294901760
        %v939 = vsub.f32 %v799, %v938
        %v940 = vand.u32 %v939, 4294901760
        %v941 = vsub.f32 %v939, %v940
        %v942 = vand.u32 %v941, 4294901760
        %943 = vmatpush1.msra.mxu0 %v942
        %944 = vmatprep.subr.mxu0 0.0
        %945 = vmatpush2.msra.mxu0 0.0
        %946 = vmatprep.subr.mxu0 0.0
        %947 = vmatpush2.msra.mxu0 0.0
        %948 = vmatprep.subr.mxu0 0.0
        %949 = vmatpush2.msra.mxu0 0.0
        %950 = vmatprep.subr.mxu0 0.0
        %951 = vmatpush2.msra.mxu0 0.0
        %952 = vmatprep.subr.mxu0 0.0
        %953 = vmatpush2.msra.mxu0 0.0
        %954 = vmatprep.subr.mxu0 0.0
        %955 = vmatpush2.msra.mxu0 0.0
        %956 = vmatprep.subr.mxu0 0.0
        %957 = vmatpush2.msra.mxu0 0.0
        %958 = vmatprep.subr.mxu0 0.0
        %959 = vmatpush2.msra.mxu0 0.0
        %960 = vmatprep.subr.mxu0 0.0
        %961 = vmatpush2.msra.mxu0 0.0
        %962 = vmatprep.subr.mxu0 0.0
        %963 = vmatpush2.msra.mxu0 0.0
        %964 = vmatprep.subr.mxu0 0.0
        %965 = vmatpush2.msra.mxu0 0.0
        %966 = vmatprep.subr.mxu0 0.0
        %967 = vmatpush2.msra.mxu0 0.0
        %968 = vmatprep.subr.mxu0 0.0
        %969 = vmatpush2.msra.mxu0 0.0
        %970 = vmatprep.subr.mxu0 0.0
        %971 = vmatpush2.msra.mxu0 0.0
        %972 = vmatprep.subr.mxu0 0.0
        %973 = vmatpush2.msra.mxu0 0.0
        %974 = vmatprep.subr.mxu0 0.0
        %975 = vmatpush2.msra.mxu0 0.0
        %976 = vmatprep.mubr.f32.mxu0 0.0
        %v977 = vand.u32 %v810, 4294901760
        %978 = vmatmul.mubr.f32.gmra.mxu0 %v977
        %v979 = vpop.f32.mrf.mxu0
        %v980 = vadd.f32 %v888, %v979
        %v981 = vpop.f32.mrf.mxu0
        %v982 = vadd.f32 %v890, %v981
        %983 = vdwg.mxu0
        %984 = vmatprep.subr.mxu0 0.0
        %985 = vmatpush1.msra.mxu0 0.0
        %986 = vmatprep.subr.mxu0 0.0
        %987 = vmatpush1.msra.mxu0 0.0
        %988 = vmatprep.subr.mxu0 0.0
        %989 = vmatpush1.msra.mxu0 0.0
        %990 = vmatprep.subr.mxu0 0.0
        %991 = vmatpush1.msra.mxu0 0.0
        %992 = vmatprep.subr.mxu0 0.0
        %993 = vmatpush1.msra.mxu0 0.0
        %994 = vmatprep.subr.mxu0 0.0
        %995 = vmatpush1.msra.mxu0 0.0
        %996 = vmatprep.subr.mxu0 0.0
        %997 = vmatpush1.msra.mxu0 0.0
        %998 = vmatprep.subr.mxu0 0.0
        %999 = vmatpush1.msra.mxu0 0.0
        %1000 = vmatprep.subr.mxu0 0.0
        %1001 = vmatpush1.msra.mxu0 0.0
        %1002 = vmatprep.subr.mxu0 0.0
        %1003 = vmatpush1.msra.mxu0 0.0
        %1004 = vmatprep.subr.mxu0 0.0
        %1005 = vmatpush1.msra.mxu0 0.0
        %1006 = vmatprep.subr.mxu0 0.0
        %1007 = vmatpush1.msra.mxu0 0.0
        %1008 = vmatprep.subr.mxu0 0.0
        %1009 = vmatpush1.msra.mxu0 0.0
        %1010 = vmatprep.subr.mxu0 0.0
        %1011 = vmatpush1.msra.mxu0 0.0
        %v1012 = vand.u32 %v802, 4294901760
        %v1013 = vsub.f32 %v802, %v1012
        %1014 = vmatprep.subr.mxu0 %v1013
        %v1015 = vand.u32 %v801, 4294901760
        %v1016 = vsub.f32 %v801, %v1015
        %1017 = vmatpush1.msra.mxu0 %v1016
        %v1018 = vand.u32 %v800, 4294901760
        %v1019 = vsub.f32 %v800, %v1018
        %1020 = vmatprep.subr.mxu0 %v1019
        %v1021 = vand.u32 %v799, 4294901760
        %v1022 = vsub.f32 %v799, %v1021
        %1023 = vmatpush1.msra.mxu0 %v1022
        %1024 = vmatprep.subr.mxu0 0.0
        %1025 = vmatpush2.msra.mxu0 0.0
        %1026 = vmatprep.subr.mxu0 0.0
        %1027 = vmatpush2.msra.mxu0 0.0
        %1028 = vmatprep.subr.mxu0 0.0
        %1029 = vmatpush2.msra.mxu0 0.0
        %1030 = vmatprep.subr.mxu0 0.0
        %1031 = vmatpush2.msra.mxu0 0.0
        %1032 = vmatprep.subr.mxu0 0.0
        %1033 = vmatpush2.msra.mxu0 0.0
        %1034 = vmatprep.subr.mxu0 0.0
        %1035 = vmatpush2.msra.mxu0 0.0
        %1036 = vmatprep.subr.mxu0 0.0
        %1037 = vmatpush2.msra.mxu0 0.0
        %1038 = vmatprep.subr.mxu0 0.0
        %1039 = vmatpush2.msra.mxu0 0.0
        %1040 = vmatprep.subr.mxu0 0.0
        %1041 = vmatpush2.msra.mxu0 0.0
        %1042 = vmatprep.subr.mxu0 0.0
        %1043 = vmatpush2.msra.mxu0 0.0
        %1044 = vmatprep.subr.mxu0 0.0
        %1045 = vmatpush2.msra.mxu0 0.0
        %1046 = vmatprep.subr.mxu0 0.0
        %1047 = vmatpush2.msra.mxu0 0.0
        %1048 = vmatprep.subr.mxu0 0.0
        %1049 = vmatpush2.msra.mxu0 0.0
        %1050 = vmatprep.subr.mxu0 0.0
        %1051 = vmatpush2.msra.mxu0 0.0
        %1052 = vmatprep.subr.mxu0 0.0
        %1053 = vmatpush2.msra.mxu0 0.0
        %1054 = vmatprep.subr.mxu0 0.0
        %1055 = vmatpush2.msra.mxu0 0.0
        %1056 = vmatprep.mubr.f32.mxu0 0.0
        %v1057 = vand.u32 %v810, 4294901760
        %v1058 = vsub.f32 %v810, %v1057
        %1059 = vmatmul.mubr.f32.gmra.mxu0 %v1058
        %v1060 = vpop.f32.mrf.mxu0
        %v1061 = vadd.f32 %v980, %v1060
        %v1062 = vpop.f32.mrf.mxu0
        %v1063 = vadd.f32 %v982, %v1062
        %1064 = vdwg.mxu0
        %1065 = vmatprep.subr.mxu0 0.0
        %1066 = vmatpush1.msra.mxu0 0.0
        %1067 = vmatprep.subr.mxu0 0.0
        %1068 = vmatpush1.msra.mxu0 0.0
        %1069 = vmatprep.subr.mxu0 0.0
        %1070 = vmatpush1.msra.mxu0 0.0
        %1071 = vmatprep.subr.mxu0 0.0
        %1072 = vmatpush1.msra.mxu0 0.0
        %1073 = vmatprep.subr.mxu0 0.0
        %1074 = vmatpush1.msra.mxu0 0.0
        %1075 = vmatprep.subr.mxu0 0.0
        %1076 = vmatpush1.msra.mxu0 0.0
        %1077 = vmatprep.subr.mxu0 0.0
        %1078 = vmatpush1.msra.mxu0 0.0
        %1079 = vmatprep.subr.mxu0 0.0
        %1080 = vmatpush1.msra.mxu0 0.0
        %1081 = vmatprep.subr.mxu0 0.0
        %1082 = vmatpush1.msra.mxu0 0.0
        %1083 = vmatprep.subr.mxu0 0.0
        %1084 = vmatpush1.msra.mxu0 0.0
        %1085 = vmatprep.subr.mxu0 0.0
        %1086 = vmatpush1.msra.mxu0 0.0
        %1087 = vmatprep.subr.mxu0 0.0
        %1088 = vmatpush1.msra.mxu0 0.0
        %1089 = vmatprep.subr.mxu0 0.0
        %1090 = vmatpush1.msra.mxu0 0.0
        %1091 = vmatprep.subr.mxu0 0.0
        %1092 = vmatpush1.msra.mxu0 0.0
        %v1093 = vand.u32 %v802, 4294901760
        %1094 = vmatprep.subr.mxu0 %v1093
        %v1095 = vand.u32 %v801, 4294901760
        %1096 = vmatpush1.msra.mxu0 %v1095
        %v1097 = vand.u32 %v800, 4294901760
        %1098 = vmatprep.subr.mxu0 %v1097
        %v1099 = vand.u32 %v799, 4294901760
        %1100 = vmatpush1.msra.mxu0 %v1099
        %1101 = vmatprep.subr.mxu0 0.0
        %1102 = vmatpush2.msra.mxu0 0.0
        %1103 = vmatprep.subr.mxu0 0.0
        %1104 = vmatpush2.msra.mxu0 0.0
        %1105 = vmatprep.subr.mxu0 0.0
        %1106 = vmatpush2.msra.mxu0 0.0
        %1107 = vmatprep.subr.mxu0 0.0
        %1108 = vmatpush2.msra.mxu0 0.0
        %1109 = vmatprep.subr.mxu0 0.0
        %1110 = vmatpush2.msra.mxu0 0.0
        %1111 = vmatprep.subr.mxu0 0.0
        %1112 = vmatpush2.msra.mxu0 0.0
        %1113 = vmatprep.subr.mxu0 0.0
        %1114 = vmatpush2.msra.mxu0 0.0
        %1115 = vmatprep.subr.mxu0 0.0
        %1116 = vmatpush2.msra.mxu0 0.0
        %1117 = vmatprep.subr.mxu0 0.0
        %1118 = vmatpush2.msra.mxu0 0.0
        %1119 = vmatprep.subr.mxu0 0.0
        %1120 = vmatpush2.msra.mxu0 0.0
        %1121 = vmatprep.subr.mxu0 0.0
        %1122 = vmatpush2.msra.mxu0 0.0
        %1123 = vmatprep.subr.mxu0 0.0
        %1124 = vmatpush2.msra.mxu0 0.0
        %1125 = vmatprep.subr.mxu0 0.0
        %1126 = vmatpush2.msra.mxu0 0.0
        %1127 = vmatprep.subr.mxu0 0.0
        %1128 = vmatpush2.msra.mxu0 0.0
        %1129 = vmatprep.subr.mxu0 0.0
        %1130 = vmatpush2.msra.mxu0 0.0
        %1131 = vmatprep.subr.mxu0 0.0
        %1132 = vmatpush2.msra.mxu0 0.0
        %1133 = vmatprep.mubr.f32.mxu0 0.0
        %v1134 = vand.u32 %v810, 4294901760
        %v1135 = vsub.f32 %v810, %v1134
        %v1136 = vand.u32 %v1135, 4294901760
        %1137 = vmatmul.mubr.f32.gmra.mxu0 %v1136
        %v1138 = vpop.f32.mrf.mxu0
        %v1139 = vadd.f32 %v1061, %v1138
        %v1140 = vpop.f32.mrf.mxu0
        %v1141 = vadd.f32 %v1063, %v1140
        %1142 = vdwg.mxu0
        %1143 = vmatprep.subr.mxu0 0.0
        %1144 = vmatpush1.msra.mxu0 0.0
        %1145 = vmatprep.subr.mxu0 0.0
        %1146 = vmatpush1.msra.mxu0 0.0
        %1147 = vmatprep.subr.mxu0 0.0
        %1148 = vmatpush1.msra.mxu0 0.0
        %1149 = vmatprep.subr.mxu0 0.0
        %1150 = vmatpush1.msra.mxu0 0.0
        %1151 = vmatprep.subr.mxu0 0.0
        %1152 = vmatpush1.msra.mxu0 0.0
        %1153 = vmatprep.subr.mxu0 0.0
        %1154 = vmatpush1.msra.mxu0 0.0
        %1155 = vmatprep.subr.mxu0 0.0
        %1156 = vmatpush1.msra.mxu0 0.0
        %1157 = vmatprep.subr.mxu0 0.0
        %1158 = vmatpush1.msra.mxu0 0.0
        %1159 = vmatprep.subr.mxu0 0.0
        %1160 = vmatpush1.msra.mxu0 0.0
        %1161 = vmatprep.subr.mxu0 0.0
        %1162 = vmatpush1.msra.mxu0 0.0
        %1163 = vmatprep.subr.mxu0 0.0
        %1164 = vmatpush1.msra.mxu0 0.0
        %1165 = vmatprep.subr.mxu0 0.0
        %1166 = vmatpush1.msra.mxu0 0.0
        %1167 = vmatprep.subr.mxu0 0.0
        %1168 = vmatpush1.msra.mxu0 0.0
        %1169 = vmatprep.subr.mxu0 0.0
        %1170 = vmatpush1.msra.mxu0 0.0
        %v1171 = vand.u32 %v802, 4294901760
        %v1172 = vsub.f32 %v802, %v1171
        %v1173 = vand.u32 %v1172, 4294901760
        %1174 = vmatprep.subr.mxu0 %v1173
        %v1175 = vand.u32 %v801, 4294901760
        %v1176 = vsub.f32 %v801, %v1175
        %v1177 = vand.u32 %v1176, 4294901760
        %1178 = vmatpush1.msra.mxu0 %v1177
        %v1179 = vand.u32 %v800, 4294901760
        %v1180 = vsub.f32 %v800, %v1179
        %v1181 = vand.u32 %v1180, 4294901760
        %1182 = vmatprep.subr.mxu0 %v1181
        %v1183 = vand.u32 %v799, 4294901760
        %v1184 = vsub.f32 %v799, %v1183
        %v1185 = vand.u32 %v1184, 4294901760
        %1186 = vmatpush1.msra.mxu0 %v1185
        %1187 = vmatprep.subr.mxu0 0.0
        %1188 = vmatpush2.msra.mxu0 0.0
        %1189 = vmatprep.subr.mxu0 0.0
        %1190 = vmatpush2.msra.mxu0 0.0
        %1191 = vmatprep.subr.mxu0 0.0
        %1192 = vmatpush2.msra.mxu0 0.0
        %1193 = vmatprep.subr.mxu0 0.0
        %1194 = vmatpush2.msra.mxu0 0.0
        %1195 = vmatprep.subr.mxu0 0.0
        %1196 = vmatpush2.msra.mxu0 0.0
        %1197 = vmatprep.subr.mxu0 0.0
        %1198 = vmatpush2.msra.mxu0 0.0
        %1199 = vmatprep.subr.mxu0 0.0
        %1200 = vmatpush2.msra.mxu0 0.0
        %1201 = vmatprep.subr.mxu0 0.0
        %1202 = vmatpush2.msra.mxu0 0.0
        %1203 = vmatprep.subr.mxu0 0.0
        %1204 = vmatpush2.msra.mxu0 0.0
        %1205 = vmatprep.subr.mxu0 0.0
        %1206 = vmatpush2.msra.mxu0 0.0
        %1207 = vmatprep.subr.mxu0 0.0
        %1208 = vmatpush2.msra.mxu0 0.0
        %1209 = vmatprep.subr.mxu0 0.0
        %1210 = vmatpush2.msra.mxu0 0.0
        %1211 = vmatprep.subr.mxu0 0.0
        %1212 = vmatpush2.msra.mxu0 0.0
        %1213 = vmatprep.subr.mxu0 0.0
        %1214 = vmatpush2.msra.mxu0 0.0
        %1215 = vmatprep.subr.mxu0 0.0
        %1216 = vmatpush2.msra.mxu0 0.0
        %1217 = vmatprep.subr.mxu0 0.0
        %1218 = vmatpush2.msra.mxu0 0.0
        %1219 = vmatprep.mubr.f32.mxu0 0.0
        %v1220 = vand.u32 %v810, 4294901760
        %1221 = vmatmul.mubr.f32.gmra.mxu0 %v1220
        %v1222 = vpop.f32.mrf.mxu0
        %v1223 = vadd.f32 %v1139, %v1222
        %v1224 = vpop.f32.mrf.mxu0
        %v1225 = vadd.f32 %v1141, %v1224
        %1226 = vdwg.mxu0
        %1227 = vmatprep.subr.mxu0 0.0
        %1228 = vmatpush1.msra.mxu0 0.0
        %1229 = vmatprep.subr.mxu0 0.0
        %1230 = vmatpush1.msra.mxu0 0.0
        %1231 = vmatprep.subr.mxu0 0.0
        %1232 = vmatpush1.msra.mxu0 0.0
        %1233 = vmatprep.subr.mxu0 0.0
        %1234 = vmatpush1.msra.mxu0 0.0
        %1235 = vmatprep.subr.mxu0 0.0
        %1236 = vmatpush1.msra.mxu0 0.0
        %1237 = vmatprep.subr.mxu0 0.0
        %1238 = vmatpush1.msra.mxu0 0.0
        %1239 = vmatprep.subr.mxu0 0.0
        %1240 = vmatpush1.msra.mxu0 0.0
        %1241 = vmatprep.subr.mxu0 0.0
        %1242 = vmatpush1.msra.mxu0 0.0
        %1243 = vmatprep.subr.mxu0 0.0
        %1244 = vmatpush1.msra.mxu0 0.0
        %1245 = vmatprep.subr.mxu0 0.0
        %1246 = vmatpush1.msra.mxu0 0.0
        %1247 = vmatprep.subr.mxu0 0.0
        %1248 = vmatpush1.msra.mxu0 0.0
        %1249 = vmatprep.subr.mxu0 0.0
        %1250 = vmatpush1.msra.mxu0 0.0
        %1251 = vmatprep.subr.mxu0 0.0
        %1252 = vmatpush1.msra.mxu0 0.0
        %1253 = vmatprep.subr.mxu0 0.0
        %1254 = vmatpush1.msra.mxu0 0.0
        %v1255 = vand.u32 %v802, 4294901760
        %1256 = vmatprep.subr.mxu0 %v1255
        %v1257 = vand.u32 %v801, 4294901760
        %1258 = vmatpush1.msra.mxu0 %v1257
        %v1259 = vand.u32 %v800, 4294901760
        %1260 = vmatprep.subr.mxu0 %v1259
        %v1261 = vand.u32 %v799, 4294901760
        %1262 = vmatpush1.msra.mxu0 %v1261
        %1263 = vmatprep.subr.mxu0 0.0
        %1264 = vmatpush2.msra.mxu0 0.0
        %1265 = vmatprep.subr.mxu0 0.0
        %1266 = vmatpush2.msra.mxu0 0.0
        %1267 = vmatprep.subr.mxu0 0.0
        %1268 = vmatpush2.msra.mxu0 0.0
        %1269 = vmatprep.subr.mxu0 0.0
        %1270 = vmatpush2.msra.mxu0 0.0
        %1271 = vmatprep.subr.mxu0 0.0
        %1272 = vmatpush2.msra.mxu0 0.0
        %1273 = vmatprep.subr.mxu0 0.0
        %1274 = vmatpush2.msra.mxu0 0.0
        %1275 = vmatprep.subr.mxu0 0.0
        %1276 = vmatpush2.msra.mxu0 0.0
        %1277 = vmatprep.subr.mxu0 0.0
        %1278 = vmatpush2.msra.mxu0 0.0
        %1279 = vmatprep.subr.mxu0 0.0
        %1280 = vmatpush2.msra.mxu0 0.0
        %1281 = vmatprep.subr.mxu0 0.0
        %1282 = vmatpush2.msra.mxu0 0.0
        %1283 = vmatprep.subr.mxu0 0.0
        %1284 = vmatpush2.msra.mxu0 0.0
        %1285 = vmatprep.subr.mxu0 0.0
        %1286 = vmatpush2.msra.mxu0 0.0
        %1287 = vmatprep.subr.mxu0 0.0
        %1288 = vmatpush2.msra.mxu0 0.0
        %1289 = vmatprep.subr.mxu0 0.0
        %1290 = vmatpush2.msra.mxu0 0.0
        %1291 = vmatprep.subr.mxu0 0.0
        %1292 = vmatpush2.msra.mxu0 0.0
        %1293 = vmatprep.subr.mxu0 0.0
        %1294 = vmatpush2.msra.mxu0 0.0
        %1295 = vmatprep.mubr.f32.mxu0 0.0
        %v1296 = vand.u32 %v810, 4294901760
        %1297 = vmatmul.mubr.f32.gmra.mxu0 %v1296
        %v1298 = vpop.f32.mrf.mxu0
        %v1299 = vadd.f32 %v1223, %v1298
        %v1300 = vpop.f32.mrf.mxu0
        %v1301 = vadd.f32 %v1225, %v1300
        %1302 = vdwg.mxu0
        %v1303 = vmax.f32 %v1299, 0.0
        %v1304 = vmax.f32 %v1301, 0.0
        %v1307 = vcombine.low %v1303, %v1304
        %v1309 = vadd.f32 %v260, %v1307
        %1310 = vst [vmem:[%s242] sm:$0xff] %v1309
        %s1311 = sand.u32 %s153, 1
        %s1312 = scalar_lea.sflag [#allocation3], %s1311
        %s1313 = sand.u32 %s153, 1
        %s1314 = smul.addr %s1313, 8
        %s1315 = scalar_lea.vmem [#allocation2], %s1314
        // Predicated region
        $region41: #{tpu_custom_call.1} parent=39 // pred_check
          %p1316 = pneg %p163
        $region42: #{tpu_custom_call.1} parent=39 // pred_check_branch
          %1318 = sbr.rel (%p1316) target = $region44
        $region43: #{tpu_custom_call.1} parent=39 // pred_region
          %s1319 = smul.u32 2, %s24
          %s1321 = ssub.s32 128, 128
          %1322 = vsyncadd %s1312, %s1321
          %s1323 = smul.addr %s23, 2
          %s1324 = sadd.s32 %s1319, %s1323
          %s1325 = smul.addr %s1324, 64
          %s1326 = scalar_lea.hbm %s5, %s1325
          %s1328 = sshll.u32 %s1315, 4
          %s1329 = int_to_ptr.vmem [resolvable:$true] %s1328
          %1331 = dma.vmem_to_hbm [thread:$0]  %s1329, 128, %s1326, %s1312
        $region44: #{tpu_custom_call.1} parent=39 // pred_fallthru
          _
      $region40: #{tpu_custom_call.1} parent=5 // pred_fallthru
        _
      %p1332 = scmp.le.s32.totalorder 2, %s14
      // Predicated region
      $region45: #{tpu_custom_call.1} parent=5 // pred_check
        %p1333 = pneg %p1332
      $region46: #{tpu_custom_call.1} parent=5 // pred_check_branch
        %1335 = sbr.rel (%p1333) target = $region48
      $region47: #{tpu_custom_call.1} parent=5 // pred_region
        %s1336 = ssub.s32 %s14, 2
        // Predicated region
        $region49: #{tpu_custom_call.1} parent=47 // pred_check
          %p1337 = pneg %p169
        $region50: #{tpu_custom_call.1} parent=47 // pred_check_branch
          %1339 = sbr.rel (%p1337) target = $region52
        $region51: #{tpu_custom_call.1} parent=47 // pred_region
          %s1340 = sand.u32 %s154, 1
          %s1341 = scalar_lea.sflag [#allocation3], %s1340
          %s1342 = sand.u32 %s154, 1
          %s1343 = smul.addr %s1342, 8
          %s1344 = scalar_lea.vmem [#allocation2], %s1343
          %1345 = dma.done %s1341, 128
        $region52: #{tpu_custom_call.1} parent=47 // pred_fallthru
          _
      $region48: #{tpu_custom_call.1} parent=5 // pred_fallthru
        _
    $region6: #{tpu_custom_call.1} parent=1 // loop_footer
      %s18 = sadd.s32 1, %s14
    $region7: #{tpu_custom_call.1} parent=1 // loop_footer_branch
      %13 = sbr.rel target = $region3
    $region8: #{tpu_custom_call.1} parent=1 // loop_exit
      _
    %1346 = vsyncpa [#allocation3], 1
    %s1347 = scalar_lea.sflag [#allocation3], 1
    %1348 = vsyncpa %s1347, 1

</llo_original>
